<compile_context>
chip_gen: v5e
topology: v5e:2x2
jax: 0.10.0
libtpu: 0.0.40
codegen_flags: <defaults>
</compile_context>

<pallas_src>
import functools

import jax
import jax.numpy as jnp
from jax import lax
from jax.experimental import pallas as pl
from jax.experimental.pallas import tpu as pltpu


# ------------------------------ Pallas kernel -------------------------------

def _stem_kernel(x_ref, w_ref, b_ref, s_ref, o_ref, conv_buf,
                 *, Cout, H1, W1, TR2, nC):
    # x_ref:    (1, Hs*16, Ws) bf16   space-to-depth image, resident per batch
    # w_ref:    (4, Cout, 64)  bf16   folded conv weights, one slab per dc tap
    # b_ref:    (Cout, 1)      f32    frozen-BN bias
    # s_ref:    (3, W1, W2)    f32    0/1 stride-2 column-selection matrices
    # o_ref:    (1, Cout, TR2, W2) f32   pooled output band (NCHW layout)
    # conv_buf: (nC*Cout, W1)  f32    conv+BN+ReLU rows for this band
    rb = pl.program_id(1)

    w_dc = [w_ref[dc] for dc in range(4)]          # 4 x (Cout, 64) bf16
    bias = b_ref[...]                              # (Cout, 1) f32

    # ---- phase 1: conv (4 shifted K=64 matmuls) + BN bias + ReLU -----------
    base = 2 * rb * TR2 - 1                        # first (virtual) conv row
    for l in range(nC):                            # static unroll, nC = 2*TR2+1
        # clamp == maxpool clamp-to-edge; duplicates are harmless under max.
        h1 = jnp.clip(base + l, 0, H1 - 1)
        row0 = pl.multiple_of(h1 * 16, 16)
        a = x_ref[0, pl.ds(row0, 64), :]           # (64, Ws) bf16: 4 s2d rows
        acc = jnp.zeros((Cout, W1), jnp.float32)
        for dc in range(4):                        # 4x4 s2d conv taps, K=64
            acc += jnp.dot(w_dc[dc], a[:, dc:dc + W1],
                           preferred_element_type=jnp.float32)
        y = jnp.maximum(acc + bias, 0.0)           # (Cout, W1)
        conv_buf[pl.ds(l * Cout, Cout), :] = y

    # ---- phase 2: fused 3x3 / stride-2 max pool ----------------------------
    cb = conv_buf[...]                             # (nC*Cout, W1) f32
    # column taps {-1, 0, +1} + stride-2 compaction via exact 0/1 matmuls;
    # out-of-range columns select nothing -> 0, which never wins vs ReLU >= 0.
    cc = [jnp.dot(cb, s_ref[d], preferred_element_type=jnp.float32)
          for d in range(3)]                       # 3 x (nC*Cout, W2)
    cm = jnp.maximum(jnp.maximum(cc[0], cc[1]), cc[2])
    for j in range(TR2):                           # static unroll over band
        r0 = cm[(2 * j + 0) * Cout:(2 * j + 1) * Cout, :]
        r1 = cm[(2 * j + 1) * Cout:(2 * j + 2) * Cout, :]
        r2 = cm[(2 * j + 2) * Cout:(2 * j + 3) * Cout, :]
        o_ref[0, :, j, :] = jnp.maximum(jnp.maximum(r0, r1), r2)


# ------------------------------- host wrapper --------------------------------

def stem_forward(x_nchw, conv_w, bn_w, bn_b, bn_rm, bn_rv, *, eps=0.0):
    """x_nchw: (N, 3, H, W) f32.  Returns (N, Cout, ceil(H/4)-ish, ...) NCHW."""
    N, Cin, H, W = x_nchw.shape
    Cout = conv_w.shape[0]
    assert Cin == 3 and conv_w.shape[1:] == (3, 7, 7)

    # conv (k7 s2 p3) and pool (k3 s2 p1) output sizes
    H1 = (H + 2 * 3 - 7) // 2 + 1
    W1 = (W + 2 * 3 - 7) // 2 + 1
    H2 = (H1 + 2 * 1 - 3) // 2 + 1
    W2 = (W1 + 2 * 1 - 3) // 2 + 1
    Hs, Ws = H1 + 3, W1 + 3                        # space-to-depth image size

    # pooled-row band per grid step: whole image if small, else 8-row bands
    TR2 = H2 if H2 <= 8 else 8
    G = pl.cdiv(H2, TR2)
    H2p = G * TR2                                  # padded rows sliced off below
    nC = 2 * TR2 + 1                               # conv rows needed per band

    # ---- FrozenBatchNorm2d folding -----------------------------------------
    scale = bn_w * lax.rsqrt(bn_rv + eps)                          # (Cout,)
    bias = (bn_b - bn_rm * scale).astype(jnp.float32).reshape(Cout, 1)

    # ---- host re-layout (same-size data movement; no 12x im2col slab) ------
    #   x_s2d[n, r*16 + ch, s] = x_pad[n, cin, 2r+ph, 2s+pw],
    #   ch = ph*6 + pw*3 + cin   (channels 12..15 are zero padding)
    x_pad = jnp.pad(x_nchw, ((0, 0), (0, 0),
                             (3, 2 * Hs - 3 - H), (3, 2 * Ws - 3 - W)))
    x_r = x_pad.reshape(N, Cin, Hs, 2, Ws, 2)
    x_r = jnp.transpose(x_r, (0, 2, 3, 5, 1, 4)).reshape(N, Hs, 12, Ws)
    x_r = jnp.pad(x_r, ((0, 0), (0, 0), (0, 4), (0, 0)))
    x_s2d = x_r.reshape(N, Hs * 16, Ws).astype(jnp.bfloat16)

    # fold BN scale into the conv weight and re-index to s2d taps:
    #   w_all[dc, co, dr*16 + ch] = scale[co] * conv_w[co, cin, 2dr+ph, 2dc+pw]
    w_f = conv_w * scale[:, None, None, None]
    w_f = jnp.pad(w_f, ((0, 0), (0, 0), (0, 1), (0, 1)))           # kh,kw -> 8
    w_f = w_f.reshape(Cout, Cin, 4, 2, 4, 2)
    w_f = jnp.transpose(w_f, (4, 0, 2, 3, 5, 1)).reshape(4, Cout, 4, 12)
    w_f = jnp.pad(w_f, ((0, 0), (0, 0), (0, 0), (0, 4)))
    w_all = w_f.reshape(4, Cout, 64).astype(jnp.bfloat16)

    # 0/1 stride-2 column-selection matrices for the pool (offsets -1, 0, +1)
    w1i = jnp.arange(W1)[:, None]
    w2i = jnp.arange(W2)[None, :]
    sel = jnp.stack([(w1i == 2 * w2i + d - 1) for d in range(3)],
                    axis=0).astype(jnp.float32)                    # (3, W1, W2)

    kernel = functools.partial(_stem_kernel, Cout=Cout, H1=H1, W1=W1,
                               TR2=TR2, nC=nC)

    out = pl.pallas_call(
        kernel,
        out_shape=jax.ShapeDtypeStruct((N, Cout, H2p, W2), jnp.float32),
        grid_spec=pltpu.PrefetchScalarGridSpec(
            num_scalar_prefetch=0,
            grid=(N, G),
            in_specs=[
                # image block stays resident across row bands of the same n
                pl.BlockSpec((1, Hs * 16, Ws), lambda n, r: (n, 0, 0)),
                pl.BlockSpec((4, Cout, 64), lambda n, r: (0, 0, 0)),
                pl.BlockSpec((Cout, 1), lambda n, r: (0, 0)),
                pl.BlockSpec((3, W1, W2), lambda n, r: (0, 0, 0)),
            ],
            out_specs=pl.BlockSpec((1, Cout, TR2, W2),
                                   lambda n, r: (n, 0, r, 0)),
            scratch_shapes=[pltpu.VMEM((nC * Cout, W1), jnp.float32)],
        ),
        compiler_params=pltpu.CompilerParams(
            dimension_semantics=("parallel", "parallel")),
    )(x_s2d, w_all, bias, sel)

    return out[:, :, :H2, :]                       # drop padded pooled rows


# ---------------------------- pure-JAX reference -----------------------------

def stem_reference(x, conv_w, bn_w, bn_b, bn_rm, bn_rv, *, eps=0.0):
    # mirrors the kernel numerics: BN scale folded into bf16 weights, bf16
    # activations, f32 accumulation, then bias + ReLU + maxpool in f32.
    scale = bn_w * lax.rsqrt(bn_rv + eps)
    bias = bn_b - bn_rm * scale
    w = (conv_w * scale[:, None, None, None]).astype(jnp.bfloat16)
    y = lax.conv_general_dilated(
        x.astype(jnp.bfloat16), w, window_strides=(2, 2),
        padding=((3, 3), (3, 3)),
        dimension_numbers=("NCHW", "OIHW", "NCHW"),
        preferred_element_type=jnp.float32)
    y = jnp.maximum(y + bias.reshape(1, -1, 1, 1), 0.0)
    return lax.reduce_window(
        y, -jnp.inf, lax.max, window_dimensions=(1, 1, 3, 3),
        window_strides=(1, 1, 2, 2),
        padding=((0, 0), (0, 0), (1, 1), (1, 1)))


# ------------------------------------ main ------------------------------------

if __name__ == "__main__":
    N, Cin, H, W = 2, 3, 16, 16          # conv1 is fixed at 3 input channels
    Cout = 8                             # cfg.MODEL.RESNETS.STEM_OUT_CHANNELS

    key = jax.random.PRNGKey(0)
    kx, kw, kbw, kbb, krm, krv = jax.random.split(key, 6)

    x = jax.random.normal(kx, (N, Cin, H, W), dtype=jnp.float32)
    conv_w = jax.random.normal(kw, (Cout, Cin, 7, 7), dtype=jnp.float32) * 0.1
    bn_w = jax.random.normal(kbw, (Cout,), dtype=jnp.float32) * 0.1 + 1.0
    bn_b = jax.random.normal(kbb, (Cout,), dtype=jnp.float32) * 0.1
    bn_rm = jax.random.normal(krm, (Cout,), dtype=jnp.float32) * 0.1
    bn_rv = jax.random.uniform(krv, (Cout,), dtype=jnp.float32,
                               minval=0.5, maxval=1.5)

    out = jax.block_until_ready(
        jax.jit(stem_forward)(x, conv_w, bn_w, bn_b, bn_rm, bn_rv))
    ref = jax.block_until_ready(
        stem_reference(x, conv_w, bn_w, bn_b, bn_rm, bn_rv))

    assert out.shape == (N, Cout, H // 4, W // 4), out.shape
    err = float(jnp.max(jnp.abs(out - ref)))
    assert jnp.allclose(out, ref, atol=2e-3, rtol=2e-3), err
    print("KERNEL_OK")
</pallas_src>

<mosaic_0001>
module attributes {stable_mosaic.version = 11 : i64} {
  func.func @_stem_kernel(%arg0: i32, %arg1: i32, %arg2: memref<1x176x11xbf16, #tpu.memory_space<vmem>>, %arg3: memref<4x8x64xbf16, #tpu.memory_space<vmem>>, %arg4: memref<8x1xf32, #tpu.memory_space<vmem>>, %arg5: memref<3x8x4xf32, #tpu.memory_space<vmem>>, %arg6: memref<1x8x4x4xf32, #tpu.memory_space<vmem>>, %arg7: memref<72x8xf32, #tpu.memory_space<vmem>>) attributes {dimension_semantics = [#tpu.dimension_semantics<parallel>, #tpu.dimension_semantics<parallel>], iteration_bounds = array<i64: 2, 1>, scalar_prefetch = 0 : i64, scratch_operands = 1 : i64, tpu.core_type = #tpu.core_type<tc>, window_params = [{transform_indices = @transform_0, window_bounds = array<i64: 1, 176, 11>}, {pipeline_mode = #tpu.pipeline_mode<synchronous>, transform_indices = @transform_1, window_bounds = array<i64: 4, 8, 64>}, {pipeline_mode = #tpu.pipeline_mode<synchronous>, transform_indices = @transform_2, window_bounds = array<i64: 8, 1>}, {pipeline_mode = #tpu.pipeline_mode<synchronous>, transform_indices = @transform_3, window_bounds = array<i64: 3, 8, 4>}, {transform_indices = @transform_4, window_bounds = array<i64: 1, 8, 4, 4>}]} {
    %c0 = arith.constant 0 : index
    %c0_0 = arith.constant 0 : index
    %c0_1 = arith.constant 0 : index
    %0 = vector.load %arg3[%c0, %c0_0, %c0_1] : memref<4x8x64xbf16, #tpu.memory_space<vmem>>, vector<1x8x64xbf16>
    %1 = vector.shape_cast %0 : vector<1x8x64xbf16> to vector<8x64xbf16>
    %c1 = arith.constant 1 : index
    %c0_2 = arith.constant 0 : index
    %c0_3 = arith.constant 0 : index
    %2 = vector.load %arg3[%c1, %c0_2, %c0_3] : memref<4x8x64xbf16, #tpu.memory_space<vmem>>, vector<1x8x64xbf16>
    %3 = vector.shape_cast %2 : vector<1x8x64xbf16> to vector<8x64xbf16>
    %c2 = arith.constant 2 : index
    %c0_4 = arith.constant 0 : index
    %c0_5 = arith.constant 0 : index
    %4 = vector.load %arg3[%c2, %c0_4, %c0_5] : memref<4x8x64xbf16, #tpu.memory_space<vmem>>, vector<1x8x64xbf16>
    %5 = vector.shape_cast %4 : vector<1x8x64xbf16> to vector<8x64xbf16>
    %c3 = arith.constant 3 : index
    %c0_6 = arith.constant 0 : index
    %c0_7 = arith.constant 0 : index
    %6 = vector.load %arg3[%c3, %c0_6, %c0_7] : memref<4x8x64xbf16, #tpu.memory_space<vmem>>, vector<1x8x64xbf16>
    %7 = vector.shape_cast %6 : vector<1x8x64xbf16> to vector<8x64xbf16>
    %c0_8 = arith.constant 0 : index
    %c0_9 = arith.constant 0 : index
    %8 = vector.load %arg4[%c0_8, %c0_9] : memref<8x1xf32, #tpu.memory_space<vmem>>, vector<8x1xf32>
    %c2_i32 = arith.constant 2 : i32
    %9 = arith.muli %c2_i32, %arg1 : i32
    %c4_i32 = arith.constant 4 : i32
    %10 = arith.muli %9, %c4_i32 : i32
    %c1_i32 = arith.constant 1 : i32
    %11 = arith.subi %10, %c1_i32 : i32
    %c0_i32 = arith.constant 0 : i32
    %12 = arith.addi %11, %c0_i32 : i32
    %c0_i32_10 = arith.constant 0 : i32
    %c7_i32 = arith.constant 7 : i32
    %13 = arith.maxsi %c0_i32_10, %12 : i32
    %14 = arith.minsi %c7_i32, %13 : i32
    %c16_i32 = arith.constant 16 : i32
    %15 = arith.muli %14, %c16_i32 : i32
    %16 = tpu.assume_multiple %15, 16 : i32
    %c0_11 = arith.constant 0 : index
    %17 = arith.index_cast %16 : i32 to index
    %c0_12 = arith.constant 0 : index
    %18 = vector.load %arg2[%c0_11, %17, %c0_12] : memref<1x176x11xbf16, #tpu.memory_space<vmem>>, vector<1x64x11xbf16>
    %19 = vector.shape_cast %18 : vector<1x64x11xbf16> to vector<64x11xbf16>
    %cst = arith.constant 0.000000e+00 : f32
    %20 = vector.broadcast %cst : f32 to vector<8x8xf32>
    %21 = vector.extract_strided_slice %19 {offsets = [0, 0], sizes = [64, 8], strides = [1, 1]} : vector<64x11xbf16> to vector<64x8xbf16>
    %cst_13 = arith.constant dense<0.000000e+00> : vector<8x8xf32>
    %22 = tpu.matmul %1, %21, %cst_13 {dimension_numbers = #tpu.dot_dimension_numbers<[1], [0], [0], [1], [0, 0, 1, 1], [], []>} : vector<8x64xbf16>, vector<64x8xbf16>, vector<8x8xf32> -> vector<8x8xf32>
    %23 = arith.addf %20, %22 : vector<8x8xf32>
    %24 = vector.extract_strided_slice %19 {offsets = [0, 1], sizes = [64, 8], strides = [1, 1]} : vector<64x11xbf16> to vector<64x8xbf16>
    %cst_14 = arith.constant dense<0.000000e+00> : vector<8x8xf32>
    %25 = tpu.matmul %3, %24, %cst_14 {dimension_numbers = #tpu.dot_dimension_numbers<[1], [0], [0], [1], [0, 0, 1, 1], [], []>} : vector<8x64xbf16>, vector<64x8xbf16>, vector<8x8xf32> -> vector<8x8xf32>
    %26 = arith.addf %23, %25 : vector<8x8xf32>
    %27 = vector.extract_strided_slice %19 {offsets = [0, 2], sizes = [64, 8], strides = [1, 1]} : vector<64x11xbf16> to vector<64x8xbf16>
    %cst_15 = arith.constant dense<0.000000e+00> : vector<8x8xf32>
    %28 = tpu.matmul %5, %27, %cst_15 {dimension_numbers = #tpu.dot_dimension_numbers<[1], [0], [0], [1], [0, 0, 1, 1], [], []>} : vector<8x64xbf16>, vector<64x8xbf16>, vector<8x8xf32> -> vector<8x8xf32>
    %29 = arith.addf %26, %28 : vector<8x8xf32>
    %30 = vector.extract_strided_slice %19 {offsets = [0, 3], sizes = [64, 8], strides = [1, 1]} : vector<64x11xbf16> to vector<64x8xbf16>
    %cst_16 = arith.constant dense<0.000000e+00> : vector<8x8xf32>
    %31 = tpu.matmul %7, %30, %cst_16 {dimension_numbers = #tpu.dot_dimension_numbers<[1], [0], [0], [1], [0, 0, 1, 1], [], []>} : vector<8x64xbf16>, vector<64x8xbf16>, vector<8x8xf32> -> vector<8x8xf32>
    %32 = arith.addf %29, %31 : vector<8x8xf32>
    %33 = vector.broadcast %8 : vector<8x1xf32> to vector<8x8xf32>
    %34 = arith.addf %32, %33 : vector<8x8xf32>
    %cst_17 = arith.constant 0.000000e+00 : f32
    %35 = vector.broadcast %cst_17 : f32 to vector<8x8xf32>
    %36 = arith.maximumf %34, %35 : vector<8x8xf32>
    %c0_18 = arith.constant 0 : index
    %c0_19 = arith.constant 0 : index
    %37 = vector.load %arg7[%c0_18, %c0_19] : memref<72x8xf32, #tpu.memory_space<vmem>>, vector<8x8xf32>
    tpu.vector_store %arg7[%c0_18, %c0_19], %36 {strides = array<i32>} : memref<72x8xf32, #tpu.memory_space<vmem>>, vector<8x8xf32>,
    %c1_i32_20 = arith.constant 1 : i32
    %38 = arith.addi %11, %c1_i32_20 : i32
    %c0_i32_21 = arith.constant 0 : i32
    %c7_i32_22 = arith.constant 7 : i32
    %39 = arith.maxsi %c0_i32_21, %38 : i32
    %40 = arith.minsi %c7_i32_22, %39 : i32
    %c16_i32_23 = arith.constant 16 : i32
    %41 = arith.muli %40, %c16_i32_23 : i32
    %42 = tpu.assume_multiple %41, 16 : i32
    %c0_24 = arith.constant 0 : index
    %43 = arith.index_cast %42 : i32 to index
    %c0_25 = arith.constant 0 : index
    %44 = vector.load %arg2[%c0_24, %43, %c0_25] : memref<1x176x11xbf16, #tpu.memory_space<vmem>>, vector<1x64x11xbf16>
    %45 = vector.shape_cast %44 : vector<1x64x11xbf16> to vector<64x11xbf16>
    %cst_26 = arith.constant 0.000000e+00 : f32
    %46 = vector.broadcast %cst_26 : f32 to vector<8x8xf32>
    %47 = vector.extract_strided_slice %45 {offsets = [0, 0], sizes = [64, 8], strides = [1, 1]} : vector<64x11xbf16> to vector<64x8xbf16>
    %cst_27 = arith.constant dense<0.000000e+00> : vector<8x8xf32>
    %48 = tpu.matmul %1, %47, %cst_27 {dimension_numbers = #tpu.dot_dimension_numbers<[1], [0], [0], [1], [0, 0, 1, 1], [], []>} : vector<8x64xbf16>, vector<64x8xbf16>, vector<8x8xf32> -> vector<8x8xf32>
    %49 = arith.addf %46, %48 : vector<8x8xf32>
    %50 = vector.extract_strided_slice %45 {offsets = [0, 1], sizes = [64, 8], strides = [1, 1]} : vector<64x11xbf16> to vector<64x8xbf16>
    %cst_28 = arith.constant dense<0.000000e+00> : vector<8x8xf32>
    %51 = tpu.matmul %3, %50, %cst_28 {dimension_numbers = #tpu.dot_dimension_numbers<[1], [0], [0], [1], [0, 0, 1, 1], [], []>} : vector<8x64xbf16>, vector<64x8xbf16>, vector<8x8xf32> -> vector<8x8xf32>
    %52 = arith.addf %49, %51 : vector<8x8xf32>
    %53 = vector.extract_strided_slice %45 {offsets = [0, 2], sizes = [64, 8], strides = [1, 1]} : vector<64x11xbf16> to vector<64x8xbf16>
    %cst_29 = arith.constant dense<0.000000e+00> : vector<8x8xf32>
    %54 = tpu.matmul %5, %53, %cst_29 {dimension_numbers = #tpu.dot_dimension_numbers<[1], [0], [0], [1], [0, 0, 1, 1], [], []>} : vector<8x64xbf16>, vector<64x8xbf16>, vector<8x8xf32> -> vector<8x8xf32>
    %55 = arith.addf %52, %54 : vector<8x8xf32>
    %56 = vector.extract_strided_slice %45 {offsets = [0, 3], sizes = [64, 8], strides = [1, 1]} : vector<64x11xbf16> to vector<64x8xbf16>
    %cst_30 = arith.constant dense<0.000000e+00> : vector<8x8xf32>
    %57 = tpu.matmul %7, %56, %cst_30 {dimension_numbers = #tpu.dot_dimension_numbers<[1], [0], [0], [1], [0, 0, 1, 1], [], []>} : vector<8x64xbf16>, vector<64x8xbf16>, vector<8x8xf32> -> vector<8x8xf32>
    %58 = arith.addf %55, %57 : vector<8x8xf32>
    %59 = vector.broadcast %8 : vector<8x1xf32> to vector<8x8xf32>
    %60 = arith.addf %58, %59 : vector<8x8xf32>
    %cst_31 = arith.constant 0.000000e+00 : f32
    %61 = vector.broadcast %cst_31 : f32 to vector<8x8xf32>
    %62 = arith.maximumf %60, %61 : vector<8x8xf32>
    %c8 = arith.constant 8 : index
    %c0_32 = arith.constant 0 : index
    %63 = vector.load %arg7[%c8, %c0_32] : memref<72x8xf32, #tpu.memory_space<vmem>>, vector<8x8xf32>
    tpu.vector_store %arg7[%c8, %c0_32], %62 {strides = array<i32>} : memref<72x8xf32, #tpu.memory_space<vmem>>, vector<8x8xf32>,
    %c2_i32_33 = arith.constant 2 : i32
    %64 = arith.addi %11, %c2_i32_33 : i32
    %c0_i32_34 = arith.constant 0 : i32
    %c7_i32_35 = arith.constant 7 : i32
    %65 = arith.maxsi %c0_i32_34, %64 : i32
    %66 = arith.minsi %c7_i32_35, %65 : i32
    %c16_i32_36 = arith.constant 16 : i32
    %67 = arith.muli %66, %c16_i32_36 : i32
    %68 = tpu.assume_multiple %67, 16 : i32
    %c0_37 = arith.constant 0 : index
    %69 = arith.index_cast %68 : i32 to index
    %c0_38 = arith.constant 0 : index
    %70 = vector.load %arg2[%c0_37, %69, %c0_38] : memref<1x176x11xbf16, #tpu.memory_space<vmem>>, vector<1x64x11xbf16>
    %71 = vector.shape_cast %70 : vector<1x64x11xbf16> to vector<64x11xbf16>
    %cst_39 = arith.constant 0.000000e+00 : f32
    %72 = vector.broadcast %cst_39 : f32 to vector<8x8xf32>
    %73 = vector.extract_strided_slice %71 {offsets = [0, 0], sizes = [64, 8], strides = [1, 1]} : vector<64x11xbf16> to vector<64x8xbf16>
    %cst_40 = arith.constant dense<0.000000e+00> : vector<8x8xf32>
    %74 = tpu.matmul %1, %73, %cst_40 {dimension_numbers = #tpu.dot_dimension_numbers<[1], [0], [0], [1], [0, 0, 1, 1], [], []>} : vector<8x64xbf16>, vector<64x8xbf16>, vector<8x8xf32> -> vector<8x8xf32>
    %75 = arith.addf %72, %74 : vector<8x8xf32>
    %76 = vector.extract_strided_slice %71 {offsets = [0, 1], sizes = [64, 8], strides = [1, 1]} : vector<64x11xbf16> to vector<64x8xbf16>
    %cst_41 = arith.constant dense<0.000000e+00> : vector<8x8xf32>
    %77 = tpu.matmul %3, %76, %cst_41 {dimension_numbers = #tpu.dot_dimension_numbers<[1], [0], [0], [1], [0, 0, 1, 1], [], []>} : vector<8x64xbf16>, vector<64x8xbf16>, vector<8x8xf32> -> vector<8x8xf32>
    %78 = arith.addf %75, %77 : vector<8x8xf32>
    %79 = vector.extract_strided_slice %71 {offsets = [0, 2], sizes = [64, 8], strides = [1, 1]} : vector<64x11xbf16> to vector<64x8xbf16>
    %cst_42 = arith.constant dense<0.000000e+00> : vector<8x8xf32>
    %80 = tpu.matmul %5, %79, %cst_42 {dimension_numbers = #tpu.dot_dimension_numbers<[1], [0], [0], [1], [0, 0, 1, 1], [], []>} : vector<8x64xbf16>, vector<64x8xbf16>, vector<8x8xf32> -> vector<8x8xf32>
    %81 = arith.addf %78, %80 : vector<8x8xf32>
    %82 = vector.extract_strided_slice %71 {offsets = [0, 3], sizes = [64, 8], strides = [1, 1]} : vector<64x11xbf16> to vector<64x8xbf16>
    %cst_43 = arith.constant dense<0.000000e+00> : vector<8x8xf32>
    %83 = tpu.matmul %7, %82, %cst_43 {dimension_numbers = #tpu.dot_dimension_numbers<[1], [0], [0], [1], [0, 0, 1, 1], [], []>} : vector<8x64xbf16>, vector<64x8xbf16>, vector<8x8xf32> -> vector<8x8xf32>
    %84 = arith.addf %81, %83 : vector<8x8xf32>
    %85 = vector.broadcast %8 : vector<8x1xf32> to vector<8x8xf32>
    %86 = arith.addf %84, %85 : vector<8x8xf32>
    %cst_44 = arith.constant 0.000000e+00 : f32
    %87 = vector.broadcast %cst_44 : f32 to vector<8x8xf32>
    %88 = arith.maximumf %86, %87 : vector<8x8xf32>
    %c16 = arith.constant 16 : index
    %c0_45 = arith.constant 0 : index
    %89 = vector.load %arg7[%c16, %c0_45] : memref<72x8xf32, #tpu.memory_space<vmem>>, vector<8x8xf32>
    tpu.vector_store %arg7[%c16, %c0_45], %88 {strides = array<i32>} : memref<72x8xf32, #tpu.memory_space<vmem>>, vector<8x8xf32>,
    %c3_i32 = arith.constant 3 : i32
    %90 = arith.addi %11, %c3_i32 : i32
    %c0_i32_46 = arith.constant 0 : i32
    %c7_i32_47 = arith.constant 7 : i32
    %91 = arith.maxsi %c0_i32_46, %90 : i32
    %92 = arith.minsi %c7_i32_47, %91 : i32
    %c16_i32_48 = arith.constant 16 : i32
    %93 = arith.muli %92, %c16_i32_48 : i32
    %94 = tpu.assume_multiple %93, 16 : i32
    %c0_49 = arith.constant 0 : index
    %95 = arith.index_cast %94 : i32 to index
    %c0_50 = arith.constant 0 : index
    %96 = vector.load %arg2[%c0_49, %95, %c0_50] : memref<1x176x11xbf16, #tpu.memory_space<vmem>>, vector<1x64x11xbf16>
    %97 = vector.shape_cast %96 : vector<1x64x11xbf16> to vector<64x11xbf16>
    %cst_51 = arith.constant 0.000000e+00 : f32
    %98 = vector.broadcast %cst_51 : f32 to vector<8x8xf32>
    %99 = vector.extract_strided_slice %97 {offsets = [0, 0], sizes = [64, 8], strides = [1, 1]} : vector<64x11xbf16> to vector<64x8xbf16>
    %cst_52 = arith.constant dense<0.000000e+00> : vector<8x8xf32>
    %100 = tpu.matmul %1, %99, %cst_52 {dimension_numbers = #tpu.dot_dimension_numbers<[1], [0], [0], [1], [0, 0, 1, 1], [], []>} : vector<8x64xbf16>, vector<64x8xbf16>, vector<8x8xf32> -> vector<8x8xf32>
    %101 = arith.addf %98, %100 : vector<8x8xf32>
    %102 = vector.extract_strided_slice %97 {offsets = [0, 1], sizes = [64, 8], strides = [1, 1]} : vector<64x11xbf16> to vector<64x8xbf16>
    %cst_53 = arith.constant dense<0.000000e+00> : vector<8x8xf32>
    %103 = tpu.matmul %3, %102, %cst_53 {dimension_numbers = #tpu.dot_dimension_numbers<[1], [0], [0], [1], [0, 0, 1, 1], [], []>} : vector<8x64xbf16>, vector<64x8xbf16>, vector<8x8xf32> -> vector<8x8xf32>
    %104 = arith.addf %101, %103 : vector<8x8xf32>
    %105 = vector.extract_strided_slice %97 {offsets = [0, 2], sizes = [64, 8], strides = [1, 1]} : vector<64x11xbf16> to vector<64x8xbf16>
    %cst_54 = arith.constant dense<0.000000e+00> : vector<8x8xf32>
    %106 = tpu.matmul %5, %105, %cst_54 {dimension_numbers = #tpu.dot_dimension_numbers<[1], [0], [0], [1], [0, 0, 1, 1], [], []>} : vector<8x64xbf16>, vector<64x8xbf16>, vector<8x8xf32> -> vector<8x8xf32>
    %107 = arith.addf %104, %106 : vector<8x8xf32>
    %108 = vector.extract_strided_slice %97 {offsets = [0, 3], sizes = [64, 8], strides = [1, 1]} : vector<64x11xbf16> to vector<64x8xbf16>
    %cst_55 = arith.constant dense<0.000000e+00> : vector<8x8xf32>
    %109 = tpu.matmul %7, %108, %cst_55 {dimension_numbers = #tpu.dot_dimension_numbers<[1], [0], [0], [1], [0, 0, 1, 1], [], []>} : vector<8x64xbf16>, vector<64x8xbf16>, vector<8x8xf32> -> vector<8x8xf32>
    %110 = arith.addf %107, %109 : vector<8x8xf32>
    %111 = vector.broadcast %8 : vector<8x1xf32> to vector<8x8xf32>
    %112 = arith.addf %110, %111 : vector<8x8xf32>
    %cst_56 = arith.constant 0.000000e+00 : f32
    %113 = vector.broadcast %cst_56 : f32 to vector<8x8xf32>
    %114 = arith.maximumf %112, %113 : vector<8x8xf32>
    %c24 = arith.constant 24 : index
    %c0_57 = arith.constant 0 : index
    %115 = vector.load %arg7[%c24, %c0_57] : memref<72x8xf32, #tpu.memory_space<vmem>>, vector<8x8xf32>
    tpu.vector_store %arg7[%c24, %c0_57], %114 {strides = array<i32>} : memref<72x8xf32, #tpu.memory_space<vmem>>, vector<8x8xf32>,
    %c4_i32_58 = arith.constant 4 : i32
    %116 = arith.addi %11, %c4_i32_58 : i32
    %c0_i32_59 = arith.constant 0 : i32
    %c7_i32_60 = arith.constant 7 : i32
    %117 = arith.maxsi %c0_i32_59, %116 : i32
    %118 = arith.minsi %c7_i32_60, %117 : i32
    %c16_i32_61 = arith.constant 16 : i32
    %119 = arith.muli %118, %c16_i32_61 : i32
    %120 = tpu.assume_multiple %119, 16 : i32
    %c0_62 = arith.constant 0 : index
    %121 = arith.index_cast %120 : i32 to index
    %c0_63 = arith.constant 0 : index
    %122 = vector.load %arg2[%c0_62, %121, %c0_63] : memref<1x176x11xbf16, #tpu.memory_space<vmem>>, vector<1x64x11xbf16>
    %123 = vector.shape_cast %122 : vector<1x64x11xbf16> to vector<64x11xbf16>
    %cst_64 = arith.constant 0.000000e+00 : f32
    %124 = vector.broadcast %cst_64 : f32 to vector<8x8xf32>
    %125 = vector.extract_strided_slice %123 {offsets = [0, 0], sizes = [64, 8], strides = [1, 1]} : vector<64x11xbf16> to vector<64x8xbf16>
    %cst_65 = arith.constant dense<0.000000e+00> : vector<8x8xf32>
    %126 = tpu.matmul %1, %125, %cst_65 {dimension_numbers = #tpu.dot_dimension_numbers<[1], [0], [0], [1], [0, 0, 1, 1], [], []>} : vector<8x64xbf16>, vector<64x8xbf16>, vector<8x8xf32> -> vector<8x8xf32>
    %127 = arith.addf %124, %126 : vector<8x8xf32>
    %128 = vector.extract_strided_slice %123 {offsets = [0, 1], sizes = [64, 8], strides = [1, 1]} : vector<64x11xbf16> to vector<64x8xbf16>
    %cst_66 = arith.constant dense<0.000000e+00> : vector<8x8xf32>
    %129 = tpu.matmul %3, %128, %cst_66 {dimension_numbers = #tpu.dot_dimension_numbers<[1], [0], [0], [1], [0, 0, 1, 1], [], []>} : vector<8x64xbf16>, vector<64x8xbf16>, vector<8x8xf32> -> vector<8x8xf32>
    %130 = arith.addf %127, %129 : vector<8x8xf32>
    %131 = vector.extract_strided_slice %123 {offsets = [0, 2], sizes = [64, 8], strides = [1, 1]} : vector<64x11xbf16> to vector<64x8xbf16>
    %cst_67 = arith.constant dense<0.000000e+00> : vector<8x8xf32>
    %132 = tpu.matmul %5, %131, %cst_67 {dimension_numbers = #tpu.dot_dimension_numbers<[1], [0], [0], [1], [0, 0, 1, 1], [], []>} : vector<8x64xbf16>, vector<64x8xbf16>, vector<8x8xf32> -> vector<8x8xf32>
    %133 = arith.addf %130, %132 : vector<8x8xf32>
    %134 = vector.extract_strided_slice %123 {offsets = [0, 3], sizes = [64, 8], strides = [1, 1]} : vector<64x11xbf16> to vector<64x8xbf16>
    %cst_68 = arith.constant dense<0.000000e+00> : vector<8x8xf32>
    %135 = tpu.matmul %7, %134, %cst_68 {dimension_numbers = #tpu.dot_dimension_numbers<[1], [0], [0], [1], [0, 0, 1, 1], [], []>} : vector<8x64xbf16>, vector<64x8xbf16>, vector<8x8xf32> -> vector<8x8xf32>
    %136 = arith.addf %133, %135 : vector<8x8xf32>
    %137 = vector.broadcast %8 : vector<8x1xf32> to vector<8x8xf32>
    %138 = arith.addf %136, %137 : vector<8x8xf32>
    %cst_69 = arith.constant 0.000000e+00 : f32
    %139 = vector.broadcast %cst_69 : f32 to vector<8x8xf32>
    %140 = arith.maximumf %138, %139 : vector<8x8xf32>
    %c32 = arith.constant 32 : index
    %c0_70 = arith.constant 0 : index
    %141 = vector.load %arg7[%c32, %c0_70] : memref<72x8xf32, #tpu.memory_space<vmem>>, vector<8x8xf32>
    tpu.vector_store %arg7[%c32, %c0_70], %140 {strides = array<i32>} : memref<72x8xf32, #tpu.memory_space<vmem>>, vector<8x8xf32>,
    %c5_i32 = arith.constant 5 : i32
    %142 = arith.addi %11, %c5_i32 : i32
    %c0_i32_71 = arith.constant 0 : i32
    %c7_i32_72 = arith.constant 7 : i32
    %143 = arith.maxsi %c0_i32_71, %142 : i32
    %144 = arith.minsi %c7_i32_72, %143 : i32
    %c16_i32_73 = arith.constant 16 : i32
    %145 = arith.muli %144, %c16_i32_73 : i32
    %146 = tpu.assume_multiple %145, 16 : i32
    %c0_74 = arith.constant 0 : index
    %147 = arith.index_cast %146 : i32 to index
    %c0_75 = arith.constant 0 : index
    %148 = vector.load %arg2[%c0_74, %147, %c0_75] : memref<1x176x11xbf16, #tpu.memory_space<vmem>>, vector<1x64x11xbf16>
    %149 = vector.shape_cast %148 : vector<1x64x11xbf16> to vector<64x11xbf16>
    %cst_76 = arith.constant 0.000000e+00 : f32
    %150 = vector.broadcast %cst_76 : f32 to vector<8x8xf32>
    %151 = vector.extract_strided_slice %149 {offsets = [0, 0], sizes = [64, 8], strides = [1, 1]} : vector<64x11xbf16> to vector<64x8xbf16>
    %cst_77 = arith.constant dense<0.000000e+00> : vector<8x8xf32>
    %152 = tpu.matmul %1, %151, %cst_77 {dimension_numbers = #tpu.dot_dimension_numbers<[1], [0], [0], [1], [0, 0, 1, 1], [], []>} : vector<8x64xbf16>, vector<64x8xbf16>, vector<8x8xf32> -> vector<8x8xf32>
    %153 = arith.addf %150, %152 : vector<8x8xf32>
    %154 = vector.extract_strided_slice %149 {offsets = [0, 1], sizes = [64, 8], strides = [1, 1]} : vector<64x11xbf16> to vector<64x8xbf16>
    %cst_78 = arith.constant dense<0.000000e+00> : vector<8x8xf32>
    %155 = tpu.matmul %3, %154, %cst_78 {dimension_numbers = #tpu.dot_dimension_numbers<[1], [0], [0], [1], [0, 0, 1, 1], [], []>} : vector<8x64xbf16>, vector<64x8xbf16>, vector<8x8xf32> -> vector<8x8xf32>
    %156 = arith.addf %153, %155 : vector<8x8xf32>
    %157 = vector.extract_strided_slice %149 {offsets = [0, 2], sizes = [64, 8], strides = [1, 1]} : vector<64x11xbf16> to vector<64x8xbf16>
    %cst_79 = arith.constant dense<0.000000e+00> : vector<8x8xf32>
    %158 = tpu.matmul %5, %157, %cst_79 {dimension_numbers = #tpu.dot_dimension_numbers<[1], [0], [0], [1], [0, 0, 1, 1], [], []>} : vector<8x64xbf16>, vector<64x8xbf16>, vector<8x8xf32> -> vector<8x8xf32>
    %159 = arith.addf %156, %158 : vector<8x8xf32>
    %160 = vector.extract_strided_slice %149 {offsets = [0, 3], sizes = [64, 8], strides = [1, 1]} : vector<64x11xbf16> to vector<64x8xbf16>
    %cst_80 = arith.constant dense<0.000000e+00> : vector<8x8xf32>
    %161 = tpu.matmul %7, %160, %cst_80 {dimension_numbers = #tpu.dot_dimension_numbers<[1], [0], [0], [1], [0, 0, 1, 1], [], []>} : vector<8x64xbf16>, vector<64x8xbf16>, vector<8x8xf32> -> vector<8x8xf32>
    %162 = arith.addf %159, %161 : vector<8x8xf32>
    %163 = vector.broadcast %8 : vector<8x1xf32> to vector<8x8xf32>
    %164 = arith.addf %162, %163 : vector<8x8xf32>
    %cst_81 = arith.constant 0.000000e+00 : f32
    %165 = vector.broadcast %cst_81 : f32 to vector<8x8xf32>
    %166 = arith.maximumf %164, %165 : vector<8x8xf32>
    %c40 = arith.constant 40 : index
    %c0_82 = arith.constant 0 : index
    %167 = vector.load %arg7[%c40, %c0_82] : memref<72x8xf32, #tpu.memory_space<vmem>>, vector<8x8xf32>
    tpu.vector_store %arg7[%c40, %c0_82], %166 {strides = array<i32>} : memref<72x8xf32, #tpu.memory_space<vmem>>, vector<8x8xf32>,
    %c6_i32 = arith.constant 6 : i32
    %168 = arith.addi %11, %c6_i32 : i32
    %c0_i32_83 = arith.constant 0 : i32
    %c7_i32_84 = arith.constant 7 : i32
    %169 = arith.maxsi %c0_i32_83, %168 : i32
    %170 = arith.minsi %c7_i32_84, %169 : i32
    %c16_i32_85 = arith.constant 16 : i32
    %171 = arith.muli %170, %c16_i32_85 : i32
    %172 = tpu.assume_multiple %171, 16 : i32
    %c0_86 = arith.constant 0 : index
    %173 = arith.index_cast %172 : i32 to index
    %c0_87 = arith.constant 0 : index
    %174 = vector.load %arg2[%c0_86, %173, %c0_87] : memref<1x176x11xbf16, #tpu.memory_space<vmem>>, vector<1x64x11xbf16>
    %175 = vector.shape_cast %174 : vector<1x64x11xbf16> to vector<64x11xbf16>
    %cst_88 = arith.constant 0.000000e+00 : f32
    %176 = vector.broadcast %cst_88 : f32 to vector<8x8xf32>
    %177 = vector.extract_strided_slice %175 {offsets = [0, 0], sizes = [64, 8], strides = [1, 1]} : vector<64x11xbf16> to vector<64x8xbf16>
    %cst_89 = arith.constant dense<0.000000e+00> : vector<8x8xf32>
    %178 = tpu.matmul %1, %177, %cst_89 {dimension_numbers = #tpu.dot_dimension_numbers<[1], [0], [0], [1], [0, 0, 1, 1], [], []>} : vector<8x64xbf16>, vector<64x8xbf16>, vector<8x8xf32> -> vector<8x8xf32>
    %179 = arith.addf %176, %178 : vector<8x8xf32>
    %180 = vector.extract_strided_slice %175 {offsets = [0, 1], sizes = [64, 8], strides = [1, 1]} : vector<64x11xbf16> to vector<64x8xbf16>
    %cst_90 = arith.constant dense<0.000000e+00> : vector<8x8xf32>
    %181 = tpu.matmul %3, %180, %cst_90 {dimension_numbers = #tpu.dot_dimension_numbers<[1], [0], [0], [1], [0, 0, 1, 1], [], []>} : vector<8x64xbf16>, vector<64x8xbf16>, vector<8x8xf32> -> vector<8x8xf32>
    %182 = arith.addf %179, %181 : vector<8x8xf32>
    %183 = vector.extract_strided_slice %175 {offsets = [0, 2], sizes = [64, 8], strides = [1, 1]} : vector<64x11xbf16> to vector<64x8xbf16>
    %cst_91 = arith.constant dense<0.000000e+00> : vector<8x8xf32>
    %184 = tpu.matmul %5, %183, %cst_91 {dimension_numbers = #tpu.dot_dimension_numbers<[1], [0], [0], [1], [0, 0, 1, 1], [], []>} : vector<8x64xbf16>, vector<64x8xbf16>, vector<8x8xf32> -> vector<8x8xf32>
    %185 = arith.addf %182, %184 : vector<8x8xf32>
    %186 = vector.extract_strided_slice %175 {offsets = [0, 3], sizes = [64, 8], strides = [1, 1]} : vector<64x11xbf16> to vector<64x8xbf16>
    %cst_92 = arith.constant dense<0.000000e+00> : vector<8x8xf32>
    %187 = tpu.matmul %7, %186, %cst_92 {dimension_numbers = #tpu.dot_dimension_numbers<[1], [0], [0], [1], [0, 0, 1, 1], [], []>} : vector<8x64xbf16>, vector<64x8xbf16>, vector<8x8xf32> -> vector<8x8xf32>
    %188 = arith.addf %185, %187 : vector<8x8xf32>
    %189 = vector.broadcast %8 : vector<8x1xf32> to vector<8x8xf32>
    %190 = arith.addf %188, %189 : vector<8x8xf32>
    %cst_93 = arith.constant 0.000000e+00 : f32
    %191 = vector.broadcast %cst_93 : f32 to vector<8x8xf32>
    %192 = arith.maximumf %190, %191 : vector<8x8xf32>
    %c48 = arith.constant 48 : index
    %c0_94 = arith.constant 0 : index
    %193 = vector.load %arg7[%c48, %c0_94] : memref<72x8xf32, #tpu.memory_space<vmem>>, vector<8x8xf32>
    tpu.vector_store %arg7[%c48, %c0_94], %192 {strides = array<i32>} : memref<72x8xf32, #tpu.memory_space<vmem>>, vector<8x8xf32>,
    %c7_i32_95 = arith.constant 7 : i32
    %194 = arith.addi %11, %c7_i32_95 : i32
    %c0_i32_96 = arith.constant 0 : i32
    %c7_i32_97 = arith.constant 7 : i32
    %195 = arith.maxsi %c0_i32_96, %194 : i32
    %196 = arith.minsi %c7_i32_97, %195 : i32
    %c16_i32_98 = arith.constant 16 : i32
    %197 = arith.muli %196, %c16_i32_98 : i32
    %198 = tpu.assume_multiple %197, 16 : i32
    %c0_99 = arith.constant 0 : index
    %199 = arith.index_cast %198 : i32 to index
    %c0_100 = arith.constant 0 : index
    %200 = vector.load %arg2[%c0_99, %199, %c0_100] : memref<1x176x11xbf16, #tpu.memory_space<vmem>>, vector<1x64x11xbf16>
    %201 = vector.shape_cast %200 : vector<1x64x11xbf16> to vector<64x11xbf16>
    %cst_101 = arith.constant 0.000000e+00 : f32
    %202 = vector.broadcast %cst_101 : f32 to vector<8x8xf32>
    %203 = vector.extract_strided_slice %201 {offsets = [0, 0], sizes = [64, 8], strides = [1, 1]} : vector<64x11xbf16> to vector<64x8xbf16>
    %cst_102 = arith.constant dense<0.000000e+00> : vector<8x8xf32>
    %204 = tpu.matmul %1, %203, %cst_102 {dimension_numbers = #tpu.dot_dimension_numbers<[1], [0], [0], [1], [0, 0, 1, 1], [], []>} : vector<8x64xbf16>, vector<64x8xbf16>, vector<8x8xf32> -> vector<8x8xf32>
    %205 = arith.addf %202, %204 : vector<8x8xf32>
    %206 = vector.extract_strided_slice %201 {offsets = [0, 1], sizes = [64, 8], strides = [1, 1]} : vector<64x11xbf16> to vector<64x8xbf16>
    %cst_103 = arith.constant dense<0.000000e+00> : vector<8x8xf32>
    %207 = tpu.matmul %3, %206, %cst_103 {dimension_numbers = #tpu.dot_dimension_numbers<[1], [0], [0], [1], [0, 0, 1, 1], [], []>} : vector<8x64xbf16>, vector<64x8xbf16>, vector<8x8xf32> -> vector<8x8xf32>
    %208 = arith.addf %205, %207 : vector<8x8xf32>
    %209 = vector.extract_strided_slice %201 {offsets = [0, 2], sizes = [64, 8], strides = [1, 1]} : vector<64x11xbf16> to vector<64x8xbf16>
    %cst_104 = arith.constant dense<0.000000e+00> : vector<8x8xf32>
    %210 = tpu.matmul %5, %209, %cst_104 {dimension_numbers = #tpu.dot_dimension_numbers<[1], [0], [0], [1], [0, 0, 1, 1], [], []>} : vector<8x64xbf16>, vector<64x8xbf16>, vector<8x8xf32> -> vector<8x8xf32>
    %211 = arith.addf %208, %210 : vector<8x8xf32>
    %212 = vector.extract_strided_slice %201 {offsets = [0, 3], sizes = [64, 8], strides = [1, 1]} : vector<64x11xbf16> to vector<64x8xbf16>
    %cst_105 = arith.constant dense<0.000000e+00> : vector<8x8xf32>
    %213 = tpu.matmul %7, %212, %cst_105 {dimension_numbers = #tpu.dot_dimension_numbers<[1], [0], [0], [1], [0, 0, 1, 1], [], []>} : vector<8x64xbf16>, vector<64x8xbf16>, vector<8x8xf32> -> vector<8x8xf32>
    %214 = arith.addf %211, %213 : vector<8x8xf32>
    %215 = vector.broadcast %8 : vector<8x1xf32> to vector<8x8xf32>
    %216 = arith.addf %214, %215 : vector<8x8xf32>
    %cst_106 = arith.constant 0.000000e+00 : f32
    %217 = vector.broadcast %cst_106 : f32 to vector<8x8xf32>
    %218 = arith.maximumf %216, %217 : vector<8x8xf32>
    %c56 = arith.constant 56 : index
    %c0_107 = arith.constant 0 : index
    %219 = vector.load %arg7[%c56, %c0_107] : memref<72x8xf32, #tpu.memory_space<vmem>>, vector<8x8xf32>
    tpu.vector_store %arg7[%c56, %c0_107], %218 {strides = array<i32>} : memref<72x8xf32, #tpu.memory_space<vmem>>, vector<8x8xf32>,
    %c8_i32 = arith.constant 8 : i32
    %220 = arith.addi %11, %c8_i32 : i32
    %c0_i32_108 = arith.constant 0 : i32
    %c7_i32_109 = arith.constant 7 : i32
    %221 = arith.maxsi %c0_i32_108, %220 : i32
    %222 = arith.minsi %c7_i32_109, %221 : i32
    %c16_i32_110 = arith.constant 16 : i32
    %223 = arith.muli %222, %c16_i32_110 : i32
    %224 = tpu.assume_multiple %223, 16 : i32
    %c0_111 = arith.constant 0 : index
    %225 = arith.index_cast %224 : i32 to index
    %c0_112 = arith.constant 0 : index
    %226 = vector.load %arg2[%c0_111, %225, %c0_112] : memref<1x176x11xbf16, #tpu.memory_space<vmem>>, vector<1x64x11xbf16>
    %227 = vector.shape_cast %226 : vector<1x64x11xbf16> to vector<64x11xbf16>
    %cst_113 = arith.constant 0.000000e+00 : f32
    %228 = vector.broadcast %cst_113 : f32 to vector<8x8xf32>
    %229 = vector.extract_strided_slice %227 {offsets = [0, 0], sizes = [64, 8], strides = [1, 1]} : vector<64x11xbf16> to vector<64x8xbf16>
    %cst_114 = arith.constant dense<0.000000e+00> : vector<8x8xf32>
    %230 = tpu.matmul %1, %229, %cst_114 {dimension_numbers = #tpu.dot_dimension_numbers<[1], [0], [0], [1], [0, 0, 1, 1], [], []>} : vector<8x64xbf16>, vector<64x8xbf16>, vector<8x8xf32> -> vector<8x8xf32>
    %231 = arith.addf %228, %230 : vector<8x8xf32>
    %232 = vector.extract_strided_slice %227 {offsets = [0, 1], sizes = [64, 8], strides = [1, 1]} : vector<64x11xbf16> to vector<64x8xbf16>
    %cst_115 = arith.constant dense<0.000000e+00> : vector<8x8xf32>
    %233 = tpu.matmul %3, %232, %cst_115 {dimension_numbers = #tpu.dot_dimension_numbers<[1], [0], [0], [1], [0, 0, 1, 1], [], []>} : vector<8x64xbf16>, vector<64x8xbf16>, vector<8x8xf32> -> vector<8x8xf32>
    %234 = arith.addf %231, %233 : vector<8x8xf32>
    %235 = vector.extract_strided_slice %227 {offsets = [0, 2], sizes = [64, 8], strides = [1, 1]} : vector<64x11xbf16> to vector<64x8xbf16>
    %cst_116 = arith.constant dense<0.000000e+00> : vector<8x8xf32>
    %236 = tpu.matmul %5, %235, %cst_116 {dimension_numbers = #tpu.dot_dimension_numbers<[1], [0], [0], [1], [0, 0, 1, 1], [], []>} : vector<8x64xbf16>, vector<64x8xbf16>, vector<8x8xf32> -> vector<8x8xf32>
    %237 = arith.addf %234, %236 : vector<8x8xf32>
    %238 = vector.extract_strided_slice %227 {offsets = [0, 3], sizes = [64, 8], strides = [1, 1]} : vector<64x11xbf16> to vector<64x8xbf16>
    %cst_117 = arith.constant dense<0.000000e+00> : vector<8x8xf32>
    %239 = tpu.matmul %7, %238, %cst_117 {dimension_numbers = #tpu.dot_dimension_numbers<[1], [0], [0], [1], [0, 0, 1, 1], [], []>} : vector<8x64xbf16>, vector<64x8xbf16>, vector<8x8xf32> -> vector<8x8xf32>
    %240 = arith.addf %237, %239 : vector<8x8xf32>
    %241 = vector.broadcast %8 : vector<8x1xf32> to vector<8x8xf32>
    %242 = arith.addf %240, %241 : vector<8x8xf32>
    %cst_118 = arith.constant 0.000000e+00 : f32
    %243 = vector.broadcast %cst_118 : f32 to vector<8x8xf32>
    %244 = arith.maximumf %242, %243 : vector<8x8xf32>
    %c64 = arith.constant 64 : index
    %c0_119 = arith.constant 0 : index
    %245 = vector.load %arg7[%c64, %c0_119] : memref<72x8xf32, #tpu.memory_space<vmem>>, vector<8x8xf32>
    tpu.vector_store %arg7[%c64, %c0_119], %244 {strides = array<i32>} : memref<72x8xf32, #tpu.memory_space<vmem>>, vector<8x8xf32>,
    %c0_120 = arith.constant 0 : index
    %c0_121 = arith.constant 0 : index
    %246 = vector.load %arg7[%c0_120, %c0_121] : memref<72x8xf32, #tpu.memory_space<vmem>>, vector<72x8xf32>
    %c0_122 = arith.constant 0 : index
    %c0_123 = arith.constant 0 : index
    %c0_124 = arith.constant 0 : index
    %247 = vector.load %arg5[%c0_122, %c0_123, %c0_124] : memref<3x8x4xf32, #tpu.memory_space<vmem>>, vector<1x8x4xf32>
    %248 = vector.shape_cast %247 : vector<1x8x4xf32> to vector<8x4xf32>
    %cst_125 = arith.constant dense<0.000000e+00> : vector<72x4xf32>
    %249 = tpu.matmul %246, %248, %cst_125 {dimension_numbers = #tpu.dot_dimension_numbers<[1], [0], [0], [1], [0, 0, 1, 1], [], []>} : vector<72x8xf32>, vector<8x4xf32>, vector<72x4xf32> -> vector<72x4xf32>
    %c1_126 = arith.constant 1 : index
    %c0_127 = arith.constant 0 : index
    %c0_128 = arith.constant 0 : index
    %250 = vector.load %arg5[%c1_126, %c0_127, %c0_128] : memref<3x8x4xf32, #tpu.memory_space<vmem>>, vector<1x8x4xf32>
    %251 = vector.shape_cast %250 : vector<1x8x4xf32> to vector<8x4xf32>
    %cst_129 = arith.constant dense<0.000000e+00> : vector<72x4xf32>
    %252 = tpu.matmul %246, %251, %cst_129 {dimension_numbers = #tpu.dot_dimension_numbers<[1], [0], [0], [1], [0, 0, 1, 1], [], []>} : vector<72x8xf32>, vector<8x4xf32>, vector<72x4xf32> -> vector<72x4xf32>
    %c2_130 = arith.constant 2 : index
    %c0_131 = arith.constant 0 : index
    %c0_132 = arith.constant 0 : index
    %253 = vector.load %arg5[%c2_130, %c0_131, %c0_132] : memref<3x8x4xf32, #tpu.memory_space<vmem>>, vector<1x8x4xf32>
    %254 = vector.shape_cast %253 : vector<1x8x4xf32> to vector<8x4xf32>
    %cst_133 = arith.constant dense<0.000000e+00> : vector<72x4xf32>
    %255 = tpu.matmul %246, %254, %cst_133 {dimension_numbers = #tpu.dot_dimension_numbers<[1], [0], [0], [1], [0, 0, 1, 1], [], []>} : vector<72x8xf32>, vector<8x4xf32>, vector<72x4xf32> -> vector<72x4xf32>
    %256 = arith.maximumf %249, %252 : vector<72x4xf32>
    %257 = arith.maximumf %256, %255 : vector<72x4xf32>
    %258 = vector.extract_strided_slice %257 {offsets = [0, 0], sizes = [8, 4], strides = [1, 1]} : vector<72x4xf32> to vector<8x4xf32>
    %259 = vector.extract_strided_slice %257 {offsets = [8, 0], sizes = [8, 4], strides = [1, 1]} : vector<72x4xf32> to vector<8x4xf32>
    %260 = vector.extract_strided_slice %257 {offsets = [16, 0], sizes = [8, 4], strides = [1, 1]} : vector<72x4xf32> to vector<8x4xf32>
    %261 = arith.maximumf %258, %259 : vector<8x4xf32>
    %262 = arith.maximumf %261, %260 : vector<8x4xf32>
    %c0_134 = arith.constant 0 : index
    %c0_135 = arith.constant 0 : index
    %c0_136 = arith.constant 0 : index
    %c0_137 = arith.constant 0 : index
    %263 = vector.load %arg6[%c0_134, %c0_135, %c0_136, %c0_137] : memref<1x8x4x4xf32, #tpu.memory_space<vmem>>, vector<1x8x1x4xf32>
    %264 = vector.shape_cast %263 : vector<1x8x1x4xf32> to vector<8x4xf32>
    %265 = vector.shape_cast %262 : vector<8x4xf32> to vector<1x8x1x4xf32>
    tpu.vector_store %arg6[%c0_134, %c0_135, %c0_136, %c0_137], %265 {strides = array<i32>} : memref<1x8x4x4xf32, #tpu.memory_space<vmem>>, vector<1x8x1x4xf32>,
    %266 = vector.extract_strided_slice %257 {offsets = [16, 0], sizes = [8, 4], strides = [1, 1]} : vector<72x4xf32> to vector<8x4xf32>
    %267 = vector.extract_strided_slice %257 {offsets = [24, 0], sizes = [8, 4], strides = [1, 1]} : vector<72x4xf32> to vector<8x4xf32>
    %268 = vector.extract_strided_slice %257 {offsets = [32, 0], sizes = [8, 4], strides = [1, 1]} : vector<72x4xf32> to vector<8x4xf32>
    %269 = arith.maximumf %266, %267 : vector<8x4xf32>
    %270 = arith.maximumf %269, %268 : vector<8x4xf32>
    %c0_138 = arith.constant 0 : index
    %c0_139 = arith.constant 0 : index
    %c1_140 = arith.constant 1 : index
    %c0_141 = arith.constant 0 : index
    %271 = vector.load %arg6[%c0_138, %c0_139, %c1_140, %c0_141] : memref<1x8x4x4xf32, #tpu.memory_space<vmem>>, vector<1x8x1x4xf32>
    %272 = vector.shape_cast %271 : vector<1x8x1x4xf32> to vector<8x4xf32>
    %273 = vector.shape_cast %270 : vector<8x4xf32> to vector<1x8x1x4xf32>
    tpu.vector_store %arg6[%c0_138, %c0_139, %c1_140, %c0_141], %273 {strides = array<i32>} : memref<1x8x4x4xf32, #tpu.memory_space<vmem>>, vector<1x8x1x4xf32>,
    %274 = vector.extract_strided_slice %257 {offsets = [32, 0], sizes = [8, 4], strides = [1, 1]} : vector<72x4xf32> to vector<8x4xf32>
    %275 = vector.extract_strided_slice %257 {offsets = [40, 0], sizes = [8, 4], strides = [1, 1]} : vector<72x4xf32> to vector<8x4xf32>
    %276 = vector.extract_strided_slice %257 {offsets = [48, 0], sizes = [8, 4], strides = [1, 1]} : vector<72x4xf32> to vector<8x4xf32>
    %277 = arith.maximumf %274, %275 : vector<8x4xf32>
    %278 = arith.maximumf %277, %276 : vector<8x4xf32>
    %c0_142 = arith.constant 0 : index
    %c0_143 = arith.constant 0 : index
    %c2_144 = arith.constant 2 : index
    %c0_145 = arith.constant 0 : index
    %279 = vector.load %arg6[%c0_142, %c0_143, %c2_144, %c0_145] : memref<1x8x4x4xf32, #tpu.memory_space<vmem>>, vector<1x8x1x4xf32>
    %280 = vector.shape_cast %279 : vector<1x8x1x4xf32> to vector<8x4xf32>
    %281 = vector.shape_cast %278 : vector<8x4xf32> to vector<1x8x1x4xf32>
    tpu.vector_store %arg6[%c0_142, %c0_143, %c2_144, %c0_145], %281 {strides = array<i32>} : memref<1x8x4x4xf32, #tpu.memory_space<vmem>>, vector<1x8x1x4xf32>,
    %282 = vector.extract_strided_slice %257 {offsets = [48, 0], sizes = [8, 4], strides = [1, 1]} : vector<72x4xf32> to vector<8x4xf32>
    %283 = vector.extract_strided_slice %257 {offsets = [56, 0], sizes = [8, 4], strides = [1, 1]} : vector<72x4xf32> to vector<8x4xf32>
    %284 = vector.extract_strided_slice %257 {offsets = [64, 0], sizes = [8, 4], strides = [1, 1]} : vector<72x4xf32> to vector<8x4xf32>
    %285 = arith.maximumf %282, %283 : vector<8x4xf32>
    %286 = arith.maximumf %285, %284 : vector<8x4xf32>
    %c0_146 = arith.constant 0 : index
    %c0_147 = arith.constant 0 : index
    %c3_148 = arith.constant 3 : index
    %c0_149 = arith.constant 0 : index
    %287 = vector.load %arg6[%c0_146, %c0_147, %c3_148, %c0_149] : memref<1x8x4x4xf32, #tpu.memory_space<vmem>>, vector<1x8x1x4xf32>
    %288 = vector.shape_cast %287 : vector<1x8x1x4xf32> to vector<8x4xf32>
    %289 = vector.shape_cast %286 : vector<8x4xf32> to vector<1x8x1x4xf32>
    tpu.vector_store %arg6[%c0_146, %c0_147, %c3_148, %c0_149], %289 {strides = array<i32>} : memref<1x8x4x4xf32, #tpu.memory_space<vmem>>, vector<1x8x1x4xf32>,
    return
  }
  func.func @transform_0(%arg0: i32, %arg1: i32) -> (i32, i32, i32) {
    %c0_i32 = arith.constant 0 : i32
    %c0_i32_0 = arith.constant 0 : i32
    %c0_i32_1 = arith.constant 0 : i32
    return %arg0, %c0_i32, %c0_i32_0 : i32, i32, i32
  }
  func.func @transform_1(%arg0: i32, %arg1: i32) -> (i32, i32, i32) {
    %c0_i32 = arith.constant 0 : i32
    %c0_i32_0 = arith.constant 0 : i32
    %c0_i32_1 = arith.constant 0 : i32
    %c0_i32_2 = arith.constant 0 : i32
    return %c0_i32, %c0_i32_0, %c0_i32_1 : i32, i32, i32
  }
  func.func @transform_2(%arg0: i32, %arg1: i32) -> (i32, i32) {
    %c0_i32 = arith.constant 0 : i32
    %c0_i32_0 = arith.constant 0 : i32
    %c0_i32_1 = arith.constant 0 : i32
    return %c0_i32, %c0_i32_0 : i32, i32
  }
  func.func @transform_3(%arg0: i32, %arg1: i32) -> (i32, i32, i32) {
    %c0_i32 = arith.constant 0 : i32
    %c0_i32_0 = arith.constant 0 : i32
    %c0_i32_1 = arith.constant 0 : i32
    %c0_i32_2 = arith.constant 0 : i32
    return %c0_i32, %c0_i32_0, %c0_i32_1 : i32, i32, i32
  }
  func.func @transform_4(%arg0: i32, %arg1: i32) -> (i32, i32, i32, i32) {
    %c0_i32 = arith.constant 0 : i32
    %c0_i32_0 = arith.constant 0 : i32
    %c0_i32_1 = arith.constant 0 : i32
    return %arg0, %c0_i32, %arg1, %c0_i32_0 : i32, i32, i32, i32
  }
}

</mosaic_0001>

<llo_original>
// kernel: stem_forward.1
$region0: #{stem_forward.1}
  #allocation0 [shape = 'u32[]', space=smem, size = 0x4, offset = 0x4, fixed_abs, tag = 'smem constant byte address 0x4 - core index']
  #allocation1 [shape = 'u32[72,128]{1,0:T(1,128)}', space=vmem, size = 0x9000, scoped, tag = 'internal scratch']
  #allocation2 [shape = 'f32[72,8]{1,0:T(8,128)}', space=vmem, size = 0x9000, scoped, tag = 'scratch operand']
  %s0 = inlined_call_operand.vmem [shape: bf16[2,176,11], index: 0, kind: input, shape index: {}]
  %s1 = inlined_call_operand.vmem [shape: bf16[4,8,64], index: 1, kind: input, shape index: {}]
  %s2 = inlined_call_operand.vmem [shape: f32[8,1], index: 2, kind: input, shape index: {}]
  %s3 = inlined_call_operand.vmem [shape: f32[3,8,4], index: 3, kind: input, shape index: {}]
  %s4 = inlined_call_operand.vmem [shape: f32[2,8,4,4], index: 4, kind: output, shape index: {}]
  %s5 = sld [smem:[#allocation0]]
  $region49: #{stem_forward.1} parent=0
    _
  %s7 = ssub.s32 1, %s5
  %s8 = scalar_select 0, %s7, %s5
  loop: start=0, step=1, limit=4
  $region2: #{stem_forward.1} parent=0 // loop_pre_header
    _
  $region3: #{stem_forward.1} parent=0 // loop_header
    %s10 = sphi 0, %s14
    %p11 = scmp.ge.s32.totalorder %s10, 4
    %s17 = sphi 0, %s29
    %s18 = sphi 0, %s25
    %s19 = sphi 0, %s17
    %s20 = sphi 0, %s18
    %s21 = sphi 0, %s19
    %s22 = sphi 0, %s20
    %s32 = sphi 0, %s34
    %s35 = sphi 0, %s32
    %s36 = sphi 0, %s35
    %s52 = sphi 0, %s36
    %s56 = sphi 0, %s56
    %s58 = sphi 0, %s56
    %s59 = sphi 0, %s58
    %s73 = sphi 0, %s59
    %s77 = sphi 0, %s77
    %s79 = sphi 0, %s77
    %s80 = sphi 0, %s79
    %s94 = sphi 0, %s80
    %s98 = sphi 0, %s98
    %s100 = sphi 0, %s98
    %s101 = sphi 0, %s100
    %s115 = sphi 0, %s101
    %s123 = sphi 0, %s125
    %s126 = sphi 0, %s123
    %s127 = sphi 0, %s126
    %s143 = sphi 0, %s127
  $region4: #{stem_forward.1} parent=0 // loop_header_branch
    %13 = sbr.rel (%p11) target = $region8
  $region5: #{stem_forward.1} parent=0 // loop_body
    %s15 = ssub.s32 %s10, 1
    %s16 = ssub.s32 %s10, 2
    %s23 = sadd.s32 1, %s18
    %p24 = scmp.ge.s32.totalorder %s23, 1
    %s25 = scalar_select %p24, 0, %s23
    %s26 = sadd.s32 1, %s17
    %s27 = scalar_select %p24, %s26, %s17
    %p28 = scmp.ge.s32.totalorder %s27, 2
    %s29 = scalar_select %p28, 0, %s27
    %s30 = ssub.s32 %s17, %s29
    %p31 = scmp.eq.s32.totalorder %s30, 0
    %s33 = sadd.s32 %s32, 1
    %s34 = scalar_select %p31, %s32, %s33
    %p37 = pneg %p31
    %p38 = scmp.eq.s32.totalorder %s10, 1
    %p39 = por %p37, %p38
    %p40 = scmp.ne.s32.totalorder %s32, %s35
    %p41 = scmp.eq.s32.totalorder %s10, 0
    %p42 = por %p40, %p41
    %p43 = scmp.ne.s32.totalorder %s32, %s35
    %p44 = scmp.eq.s32.totalorder %s15, 1
    %p45 = por %p43, %p44
    %p46 = scmp.ne.s32.totalorder %s35, %s36
    %p47 = scmp.eq.s32.totalorder %s15, 0
    %p48 = por %p46, %p47
    %p49 = scmp.ne.s32.totalorder %s35, %s36
    %p50 = scmp.eq.s32.totalorder %s16, 1
    %p51 = por %p49, %p50
    %p53 = scmp.ne.s32.totalorder %s36, %s52
    %p54 = scmp.eq.s32.totalorder %s16, 0
    %p55 = por %p53, %p54
    %s57 = sadd.s32 %s56, 1
    %p60 = scmp.eq.s32.totalorder %s10, 1
    %p61 = scmp.ne.s32.totalorder %s56, %s58
    %p62 = scmp.eq.s32.totalorder %s10, 0
    %p63 = por %p61, %p62
    %p64 = scmp.ne.s32.totalorder %s56, %s58
    %p65 = scmp.eq.s32.totalorder %s15, 1
    %p66 = por %p64, %p65
    %p67 = scmp.ne.s32.totalorder %s58, %s59
    %p68 = scmp.eq.s32.totalorder %s15, 0
    %p69 = por %p67, %p68
    %p70 = scmp.ne.s32.totalorder %s58, %s59
    %p71 = scmp.eq.s32.totalorder %s16, 1
    %p72 = por %p70, %p71
    %p74 = scmp.ne.s32.totalorder %s59, %s73
    %p75 = scmp.eq.s32.totalorder %s16, 0
    %p76 = por %p74, %p75
    %s78 = sadd.s32 %s77, 1
    %p81 = scmp.eq.s32.totalorder %s10, 1
    %p82 = scmp.ne.s32.totalorder %s77, %s79
    %p83 = scmp.eq.s32.totalorder %s10, 0
    %p84 = por %p82, %p83
    %p85 = scmp.ne.s32.totalorder %s77, %s79
    %p86 = scmp.eq.s32.totalorder %s15, 1
    %p87 = por %p85, %p86
    %p88 = scmp.ne.s32.totalorder %s79, %s80
    %p89 = scmp.eq.s32.totalorder %s15, 0
    %p90 = por %p88, %p89
    %p91 = scmp.ne.s32.totalorder %s79, %s80
    %p92 = scmp.eq.s32.totalorder %s16, 1
    %p93 = por %p91, %p92
    %p95 = scmp.ne.s32.totalorder %s80, %s94
    %p96 = scmp.eq.s32.totalorder %s16, 0
    %p97 = por %p95, %p96
    %s99 = sadd.s32 %s98, 1
    %p102 = scmp.eq.s32.totalorder %s10, 1
    %p103 = scmp.ne.s32.totalorder %s98, %s100
    %p104 = scmp.eq.s32.totalorder %s10, 0
    %p105 = por %p103, %p104
    %p106 = scmp.ne.s32.totalorder %s98, %s100
    %p107 = scmp.eq.s32.totalorder %s15, 1
    %p108 = por %p106, %p107
    %p109 = scmp.ne.s32.totalorder %s100, %s101
    %p110 = scmp.eq.s32.totalorder %s15, 0
    %p111 = por %p109, %p110
    %p112 = scmp.ne.s32.totalorder %s100, %s101
    %p113 = scmp.eq.s32.totalorder %s16, 1
    %p114 = por %p112, %p113
    %p116 = scmp.ne.s32.totalorder %s101, %s115
    %p117 = scmp.eq.s32.totalorder %s16, 0
    %p118 = por %p116, %p117
    %s119 = ssub.s32 %s17, %s29
    %s120 = ssub.s32 %s18, %s25
    %s121 = sor.u32 %s119, %s120
    %p122 = scmp.eq.s32.totalorder %s121, 0
    %s124 = sadd.s32 %s123, 1
    %s125 = scalar_select %p122, %s123, %s124
    %p128 = pneg %p122
    %p129 = scmp.eq.s32.totalorder %s10, 1
    %p130 = por %p128, %p129
    %p131 = scmp.ne.s32.totalorder %s123, %s126
    %p132 = scmp.eq.s32.totalorder %s10, 0
    %p133 = por %p131, %p132
    %p134 = scmp.ne.s32.totalorder %s123, %s126
    %p135 = scmp.eq.s32.totalorder %s15, 1
    %p136 = por %p134, %p135
    %p137 = scmp.ne.s32.totalorder %s126, %s127
    %p138 = scmp.eq.s32.totalorder %s15, 0
    %p139 = por %p137, %p138
    %p140 = scmp.ne.s32.totalorder %s126, %s127
    %p141 = scmp.eq.s32.totalorder %s16, 1
    %p142 = por %p140, %p141
    %p144 = scmp.ne.s32.totalorder %s127, %s143
    %p145 = scmp.eq.s32.totalorder %s16, 0
    %p146 = por %p144, %p145
    %p147 = scmp.le.s32.totalorder 1, %s10
    %p148 = scmp.lt.s32.totalorder %s10, 3
    %p149 = pnand %p147, %p148
    %p150 = pneg %p149
    // Predicated region
    $region9: #{stem_forward.1} parent=5 // pred_check
      _
    $region10: #{stem_forward.1} parent=5 // pred_check_branch
      %152 = sbr.rel (%p149) target = $region12
    $region11: #{stem_forward.1} parent=5 // pred_region
      %s153 = ssub.s32 %s10, 1
      // Predicated region
      $region13: #{stem_forward.1} parent=11 // pred_check
        %p154 = pneg %p69
      $region14: #{stem_forward.1} parent=11 // pred_check_branch
        %156 = sbr.rel (%p154) target = $region16
      $region15: #{stem_forward.1} parent=11 // pred_region
        _
      $region16: #{stem_forward.1} parent=11 // pred_fallthru
        _
      // Predicated region
      $region17: #{stem_forward.1} parent=11 // pred_check
        %p157 = pneg %p90
      $region18: #{stem_forward.1} parent=11 // pred_check_branch
        %159 = sbr.rel (%p157) target = $region20
      $region19: #{stem_forward.1} parent=11 // pred_region
        _
      $region20: #{stem_forward.1} parent=11 // pred_fallthru
        _
      // Predicated region
      $region21: #{stem_forward.1} parent=11 // pred_check
        %p160 = pneg %p111
      $region22: #{stem_forward.1} parent=11 // pred_check_branch
        %162 = sbr.rel (%p160) target = $region24
      $region23: #{stem_forward.1} parent=11 // pred_region
        _
      $region24: #{stem_forward.1} parent=11 // pred_fallthru
        _
    $region12: #{stem_forward.1} parent=5 // pred_fallthru
      _
    %p163 = scmp.lt.s32.totalorder %s10, 2
    // Predicated region
    $region25: #{stem_forward.1} parent=5 // pred_check
      %p164 = pneg %p163
    $region26: #{stem_forward.1} parent=5 // pred_check_branch
      %166 = sbr.rel (%p164) target = $region28
    $region27: #{stem_forward.1} parent=5 // pred_region
      // Predicated region
      $region29: #{stem_forward.1} parent=27 // pred_check
        %p167 = pneg %p42
      $region30: #{stem_forward.1} parent=27 // pred_check_branch
        %169 = sbr.rel (%p167) target = $region32
      $region31: #{stem_forward.1} parent=27 // pred_region
        %p170 = scmp.lt.s32.totalorder %s17, 1
        %s171 = scalar_select %p170, %s17, 1
        %s172 = smul.addr %s171, 22
        %s173 = smul.addr %s172, 4
        %s174 = scalar_lea.vmem %s0, %s173
      $region32: #{stem_forward.1} parent=27 // pred_fallthru
        _
    $region28: #{stem_forward.1} parent=5 // pred_fallthru
      _
    %p175 = scmp.le.s32.totalorder 1, %s10
    %p176 = scmp.lt.s32.totalorder %s10, 3
    %p177 = pnand %p175, %p176
    %p178 = pneg %p177
    // Predicated region
    $region33: #{stem_forward.1} parent=5 // pred_check
      _
    $region34: #{stem_forward.1} parent=5 // pred_check_branch
      %180 = sbr.rel (%p177) target = $region36
    $region35: #{stem_forward.1} parent=5 // pred_region
      %s181 = ssub.s32 %s10, 1
      %p182 = scmp.lt.s32.totalorder %s19, 1
      %s183 = scalar_select %p182, %s19, 1
      %s184 = smul.addr %s183, 22
      %s185 = smul.addr %s184, 4
      %s186 = scalar_lea.vmem %s0, %s185
      %p187 = pneg %p48
      %p188 = pneg %p45
      %p189 = pneg %p69
      %p190 = pneg %p66
      %p191 = pneg %p90
      %p192 = pneg %p87
      %p193 = pneg %p111
      %p194 = pneg %p108
      %p195 = pneg %p139
      %p196 = pneg %p136
      %p197 = scmp.lt.s32.totalorder %s19, 1
      %s198 = scalar_select %p197, %s19, 1
      %p199 = scmp.lt.s32.totalorder %s20, 0
      %s200 = scalar_select %p199, %s20, 0
      %s201 = smul.addr %s198, 8
      %s202 = sadd.s32 %s200, %s201
      %s203 = smul.addr %s202, 4
      %s204 = scalar_lea.vmem %s4, %s203
      %p205 = scmp.lt.s32.totalorder %s19, 1
      %s206 = scalar_select %p205, %s19, 1
      %s207 = smul.addr %s206, 22
      %s208 = smul.addr %s207, 4
      %s209 = scalar_lea.vmem %s0, %s208
      %p210 = scmp.lt.s32.totalorder %s19, 1
      %s211 = scalar_select %p210, %s19, 1
      %p212 = scmp.lt.s32.totalorder %s20, 0
      %s213 = scalar_select %p212, %s20, 0
      %s214 = smul.addr %s211, 8
      %s215 = sadd.s32 %s213, %s214
      %s216 = smul.addr %s215, 4
      %s217 = scalar_lea.vmem %s4, %s216
      %v219 = vld [vmem:[%s1] sm:$0xf]
      %s220 = scalar_lea.vmem %s1, 4
      %v221 = vld [vmem:[%s220] sm:$0xf]
      %s222 = scalar_lea.vmem %s1, 8
      %v223 = vld [vmem:[%s222] sm:$0xf]
      %s224 = scalar_lea.vmem %s1, 12
      %v225 = vld [vmem:[%s224] sm:$0xf]
      %v226 = vld [vmem:[%s2] sm:$0xff]
      %s227 = smul.u32 %s20, 8
      %s228 = ssub.s32 %s227, 1
      %p229 = scmp.gt.s32.totalorder %s228, 0
      %s230 = scalar_select %p229, %s228, 0
      %p231 = scmp.lt.s32.totalorder %s230, 7
      %s232 = scalar_select %p231, %s230, 7
      %s233 = smul.u32 %s232, 16
      %s234 = sshra.s32 %s233, 3
      %s235 = sand.u32 %s233, 7
      %s236 = smul.addr %s234, 4
      %s237 = scalar_lea.vmem %s209, %s236
      %v238 = vld [vmem:[%s237] sm:$0xf]
      %v239 = vld [vmem:[%s237 + $0x4] sm:$0xf]
      %v240 = vld [vmem:[%s237 + $0x8] sm:$0xf]
      %v241 = vld [vmem:[%s237 + $0xc] sm:$0xf]
      %v242 = vld [vmem:[%s237 + $0x10] sm:$0xf]
      %v243 = vld [vmem:[%s237 + $0x14] sm:$0xf]
      %v244 = vld [vmem:[%s237 + $0x18] sm:$0xf]
      %v245 = vld [vmem:[%s237 + $0x1c] sm:$0xf]
      %v254 = vunpack.c.l.b16 %v238
      %v255 = vunpack.c.l.b16 %v239
      %v256 = vunpack.c.l.b16 %v240
      %v257 = vunpack.c.l.b16 %v241
      %v258 = vunpack.c.l.b16 %v242
      %v259 = vunpack.c.l.b16 %v243
      %v260 = vunpack.c.l.b16 %v244
      %v261 = vunpack.c.l.b16 %v245
      %v262 = vpack.c.b16 %v255, %v254
      %v263 = vpack.c.b16 %v257, %v256
      %v264 = vpack.c.b16 %v259, %v258
      %v265 = vpack.c.b16 %v261, %v260
      %266 = vrot.lane.b32.xlu0 %v262, 127
      %v267 = vpop.permute.xlu0 %266
      %268 = vrot.lane.b32.xlu0 %v263, 127
      %v269 = vpop.permute.xlu0 %268
      %270 = vrot.lane.b32.xlu0 %v264, 127
      %v271 = vpop.permute.xlu0 %270
      %272 = vrot.lane.b32.xlu0 %v265, 127
      %v273 = vpop.permute.xlu0 %272
      %vm278 = vcmask 523264
      %v280 = vsel %vm278, %v221, 0
      %282 = vmatpush.bf16.msra.mxu0 0
      %283 = vmatpush.bf16.msra.mxu0 0
      %284 = vmatpush.bf16.msra.mxu0 0
      %285 = vmatpush.bf16.msra.mxu0 0
      %286 = vmatpush.bf16.msra.mxu0 %v273
      %287 = vmatpush.bf16.msra.mxu0 %v271
      %288 = vmatpush.bf16.msra.mxu0 %v269
      %289 = vmatpush.bf16.msra.mxu0 %v267
      %290 = vmatmul.bf16.gmra.mxu0 %v280
      %v291 = vpop.f32.mrf.mxu0
      %v292 = vadd.f32 0.0, %v291
      %v293 = vpop.f32.mrf.mxu0
      %294 = vdwg.mxu0
      %v300 = vsel %vm278, %v219, 0
      %302 = vmatpush.bf16.msra.mxu0 0
      %303 = vmatpush.bf16.msra.mxu0 0
      %304 = vmatpush.bf16.msra.mxu0 0
      %305 = vmatpush.bf16.msra.mxu0 0
      %306 = vmatpush.bf16.msra.mxu0 %v265
      %307 = vmatpush.bf16.msra.mxu0 %v264
      %308 = vmatpush.bf16.msra.mxu0 %v263
      %309 = vmatpush.bf16.msra.mxu0 %v262
      %310 = vmatmul.bf16.gmra.mxu0 %v300
      %v311 = vpop.f32.mrf.mxu0
      %v312 = vadd.f32 %v292, %v311
      %v313 = vpop.f32.mrf.mxu0
      %314 = vdwg.mxu0
      %315 = vrot.lane.b32.xlu0 %v262, 126
      %v316 = vpop.permute.xlu0 %315
      %317 = vrot.lane.b32.xlu0 %v263, 126
      %v318 = vpop.permute.xlu0 %317
      %319 = vrot.lane.b32.xlu0 %v264, 126
      %v320 = vpop.permute.xlu0 %319
      %321 = vrot.lane.b32.xlu0 %v265, 126
      %v322 = vpop.permute.xlu0 %321
      %v328 = vsel %vm278, %v223, 0
      %330 = vmatpush.bf16.msra.mxu0 0
      %331 = vmatpush.bf16.msra.mxu0 0
      %332 = vmatpush.bf16.msra.mxu0 0
      %333 = vmatpush.bf16.msra.mxu0 0
      %334 = vmatpush.bf16.msra.mxu0 %v322
      %335 = vmatpush.bf16.msra.mxu0 %v320
      %336 = vmatpush.bf16.msra.mxu0 %v318
      %337 = vmatpush.bf16.msra.mxu0 %v316
      %338 = vmatmul.bf16.gmra.mxu0 %v328
      %v339 = vpop.f32.mrf.mxu0
      %v340 = vadd.f32 0.0, %v339
      %v341 = vpop.f32.mrf.mxu0
      %342 = vdwg.mxu0
      %v343 = vadd.f32 %v312, %v340
      %344 = vrot.lane.b32.xlu0 %v262, 125
      %v345 = vpop.permute.xlu0 %344
      %346 = vrot.lane.b32.xlu0 %v263, 125
      %v347 = vpop.permute.xlu0 %346
      %348 = vrot.lane.b32.xlu0 %v264, 125
      %v349 = vpop.permute.xlu0 %348
      %350 = vrot.lane.b32.xlu0 %v265, 125
      %v351 = vpop.permute.xlu0 %350
      %v357 = vsel %vm278, %v225, 0
      %359 = vmatpush.bf16.msra.mxu0 0
      %360 = vmatpush.bf16.msra.mxu0 0
      %361 = vmatpush.bf16.msra.mxu0 0
      %362 = vmatpush.bf16.msra.mxu0 0
      %363 = vmatpush.bf16.msra.mxu0 %v351
      %364 = vmatpush.bf16.msra.mxu0 %v349
      %365 = vmatpush.bf16.msra.mxu0 %v347
      %366 = vmatpush.bf16.msra.mxu0 %v345
      %367 = vmatmul.bf16.gmra.mxu0 %v357
      %v368 = vpop.f32.mrf.mxu0
      %v369 = vadd.f32 0.0, %v368
      %v370 = vpop.f32.mrf.mxu0
      %371 = vdwg.mxu0
      %v372 = vadd.f32 %v343, %v369
      %374 = vset.pattern.permute.xlu0 0
      %375 = vperm.xlu0 %374, %v226
      %v376 = vpop.permute.xlu0 %375
      %v378 = vadd.f32 %v372, %v376
      %v379 = vmax.f32 %v378, 0.0
      %vm380 = vcmask 64512
      %381 = vst.msk [vmem:[#allocation2] sm:$0xff] %vm380, %v379
      %p382 = scmp.gt.s32.totalorder %s227, 0
      %s383 = scalar_select %p382, %s227, 0
      %p384 = scmp.lt.s32.totalorder %s383, 7
      %s385 = scalar_select %p384, %s383, 7
      %s386 = smul.u32 %s385, 16
      %s387 = sshra.s32 %s386, 3
      %s388 = sand.u32 %s386, 7
      %s389 = smul.addr %s387, 4
      %s390 = scalar_lea.vmem %s209, %s389
      %v391 = vld [vmem:[%s390] sm:$0xf]
      %v392 = vld [vmem:[%s390 + $0x4] sm:$0xf]
      %v393 = vld [vmem:[%s390 + $0x8] sm:$0xf]
      %v394 = vld [vmem:[%s390 + $0xc] sm:$0xf]
      %v395 = vld [vmem:[%s390 + $0x10] sm:$0xf]
      %v396 = vld [vmem:[%s390 + $0x14] sm:$0xf]
      %v397 = vld [vmem:[%s390 + $0x18] sm:$0xf]
      %v398 = vld [vmem:[%s390 + $0x1c] sm:$0xf]
      %v407 = vunpack.c.l.b16 %v391
      %v408 = vunpack.c.l.b16 %v392
      %v409 = vunpack.c.l.b16 %v393
      %v410 = vunpack.c.l.b16 %v394
      %v411 = vunpack.c.l.b16 %v395
      %v412 = vunpack.c.l.b16 %v396
      %v413 = vunpack.c.l.b16 %v397
      %v414 = vunpack.c.l.b16 %v398
      %v415 = vpack.c.b16 %v408, %v407
      %v416 = vpack.c.b16 %v410, %v409
      %v417 = vpack.c.b16 %v412, %v411
      %v418 = vpack.c.b16 %v414, %v413
      %419 = vrot.lane.b32.xlu0 %v415, 127
      %v420 = vpop.permute.xlu0 %419
      %421 = vrot.lane.b32.xlu0 %v416, 127
      %v422 = vpop.permute.xlu0 %421
      %423 = vrot.lane.b32.xlu0 %v417, 127
      %v424 = vpop.permute.xlu0 %423
      %425 = vrot.lane.b32.xlu0 %v418, 127
      %v426 = vpop.permute.xlu0 %425
      %431 = vmatpush.bf16.msra.mxu0 0
      %432 = vmatpush.bf16.msra.mxu0 0
      %433 = vmatpush.bf16.msra.mxu0 0
      %434 = vmatpush.bf16.msra.mxu0 0
      %435 = vmatpush.bf16.msra.mxu0 %v426
      %436 = vmatpush.bf16.msra.mxu0 %v424
      %437 = vmatpush.bf16.msra.mxu0 %v422
      %438 = vmatpush.bf16.msra.mxu0 %v420
      %439 = vmatmul.bf16.gmra.mxu0 %v280
      %v440 = vpop.f32.mrf.mxu0
      %v441 = vadd.f32 0.0, %v440
      %v442 = vpop.f32.mrf.mxu0
      %443 = vdwg.mxu0
      %448 = vmatpush.bf16.msra.mxu0 0
      %449 = vmatpush.bf16.msra.mxu0 0
      %450 = vmatpush.bf16.msra.mxu0 0
      %451 = vmatpush.bf16.msra.mxu0 0
      %452 = vmatpush.bf16.msra.mxu0 %v418
      %453 = vmatpush.bf16.msra.mxu0 %v417
      %454 = vmatpush.bf16.msra.mxu0 %v416
      %455 = vmatpush.bf16.msra.mxu0 %v415
      %456 = vmatmul.bf16.gmra.mxu0 %v300
      %v457 = vpop.f32.mrf.mxu0
      %v458 = vadd.f32 %v441, %v457
      %v459 = vpop.f32.mrf.mxu0
      %460 = vdwg.mxu0
      %461 = vrot.lane.b32.xlu0 %v415, 126
      %v462 = vpop.permute.xlu0 %461
      %463 = vrot.lane.b32.xlu0 %v416, 126
      %v464 = vpop.permute.xlu0 %463
      %465 = vrot.lane.b32.xlu0 %v417, 126
      %v466 = vpop.permute.xlu0 %465
      %467 = vrot.lane.b32.xlu0 %v418, 126
      %v468 = vpop.permute.xlu0 %467
      %473 = vmatpush.bf16.msra.mxu0 0
      %474 = vmatpush.bf16.msra.mxu0 0
      %475 = vmatpush.bf16.msra.mxu0 0
      %476 = vmatpush.bf16.msra.mxu0 0
      %477 = vmatpush.bf16.msra.mxu0 %v468
      %478 = vmatpush.bf16.msra.mxu0 %v466
      %479 = vmatpush.bf16.msra.mxu0 %v464
      %480 = vmatpush.bf16.msra.mxu0 %v462
      %481 = vmatmul.bf16.gmra.mxu0 %v328
      %v482 = vpop.f32.mrf.mxu0
      %v483 = vadd.f32 0.0, %v482
      %v484 = vpop.f32.mrf.mxu0
      %485 = vdwg.mxu0
      %v486 = vadd.f32 %v458, %v483
      %487 = vrot.lane.b32.xlu0 %v415, 125
      %v488 = vpop.permute.xlu0 %487
      %489 = vrot.lane.b32.xlu0 %v416, 125
      %v490 = vpop.permute.xlu0 %489
      %491 = vrot.lane.b32.xlu0 %v417, 125
      %v492 = vpop.permute.xlu0 %491
      %493 = vrot.lane.b32.xlu0 %v418, 125
      %v494 = vpop.permute.xlu0 %493
      %499 = vmatpush.bf16.msra.mxu0 0
      %500 = vmatpush.bf16.msra.mxu0 0
      %501 = vmatpush.bf16.msra.mxu0 0
      %502 = vmatpush.bf16.msra.mxu0 0
      %503 = vmatpush.bf16.msra.mxu0 %v494
      %504 = vmatpush.bf16.msra.mxu0 %v492
      %505 = vmatpush.bf16.msra.mxu0 %v490
      %506 = vmatpush.bf16.msra.mxu0 %v488
      %507 = vmatmul.bf16.gmra.mxu0 %v357
      %v508 = vpop.f32.mrf.mxu0
      %v509 = vadd.f32 0.0, %v508
      %v510 = vpop.f32.mrf.mxu0
      %511 = vdwg.mxu0
      %v512 = vadd.f32 %v486, %v509
      %v513 = vadd.f32 %v512, %v376
      %v514 = vmax.f32 %v513, 0.0
      %515 = vst.msk [vmem:[#allocation2 + $0x8] sm:$0xff] %vm380, %v514
      %s516 = sadd.s32 %s227, 1
      %p517 = scmp.gt.s32.totalorder %s516, 0
      %s518 = scalar_select %p517, %s516, 0
      %p519 = scmp.lt.s32.totalorder %s518, 7
      %s520 = scalar_select %p519, %s518, 7
      %s521 = smul.u32 %s520, 16
      %s522 = sshra.s32 %s521, 3
      %s523 = sand.u32 %s521, 7
      %s524 = smul.addr %s522, 4
      %s525 = scalar_lea.vmem %s209, %s524
      %v526 = vld [vmem:[%s525] sm:$0xf]
      %v527 = vld [vmem:[%s525 + $0x4] sm:$0xf]
      %v528 = vld [vmem:[%s525 + $0x8] sm:$0xf]
      %v529 = vld [vmem:[%s525 + $0xc] sm:$0xf]
      %v530 = vld [vmem:[%s525 + $0x10] sm:$0xf]
      %v531 = vld [vmem:[%s525 + $0x14] sm:$0xf]
      %v532 = vld [vmem:[%s525 + $0x18] sm:$0xf]
      %v533 = vld [vmem:[%s525 + $0x1c] sm:$0xf]
      %v542 = vunpack.c.l.b16 %v526
      %v543 = vunpack.c.l.b16 %v527
      %v544 = vunpack.c.l.b16 %v528
      %v545 = vunpack.c.l.b16 %v529
      %v546 = vunpack.c.l.b16 %v530
      %v547 = vunpack.c.l.b16 %v531
      %v548 = vunpack.c.l.b16 %v532
      %v549 = vunpack.c.l.b16 %v533
      %v550 = vpack.c.b16 %v543, %v542
      %v551 = vpack.c.b16 %v545, %v544
      %v552 = vpack.c.b16 %v547, %v546
      %v553 = vpack.c.b16 %v549, %v548
      %554 = vrot.lane.b32.xlu0 %v550, 127
      %v555 = vpop.permute.xlu0 %554
      %556 = vrot.lane.b32.xlu0 %v551, 127
      %v557 = vpop.permute.xlu0 %556
      %558 = vrot.lane.b32.xlu0 %v552, 127
      %v559 = vpop.permute.xlu0 %558
      %560 = vrot.lane.b32.xlu0 %v553, 127
      %v561 = vpop.permute.xlu0 %560
      %566 = vmatpush.bf16.msra.mxu0 0
      %567 = vmatpush.bf16.msra.mxu0 0
      %568 = vmatpush.bf16.msra.mxu0 0
      %569 = vmatpush.bf16.msra.mxu0 0
      %570 = vmatpush.bf16.msra.mxu0 %v561
      %571 = vmatpush.bf16.msra.mxu0 %v559
      %572 = vmatpush.bf16.msra.mxu0 %v557
      %573 = vmatpush.bf16.msra.mxu0 %v555
      %574 = vmatmul.bf16.gmra.mxu0 %v280
      %v575 = vpop.f32.mrf.mxu0
      %v576 = vadd.f32 0.0, %v575
      %v577 = vpop.f32.mrf.mxu0
      %578 = vdwg.mxu0
      %583 = vmatpush.bf16.msra.mxu0 0
      %584 = vmatpush.bf16.msra.mxu0 0
      %585 = vmatpush.bf16.msra.mxu0 0
      %586 = vmatpush.bf16.msra.mxu0 0
      %587 = vmatpush.bf16.msra.mxu0 %v553
      %588 = vmatpush.bf16.msra.mxu0 %v552
      %589 = vmatpush.bf16.msra.mxu0 %v551
      %590 = vmatpush.bf16.msra.mxu0 %v550
      %591 = vmatmul.bf16.gmra.mxu0 %v300
      %v592 = vpop.f32.mrf.mxu0
      %v593 = vadd.f32 %v576, %v592
      %v594 = vpop.f32.mrf.mxu0
      %595 = vdwg.mxu0
      %596 = vrot.lane.b32.xlu0 %v550, 126
      %v597 = vpop.permute.xlu0 %596
      %598 = vrot.lane.b32.xlu0 %v551, 126
      %v599 = vpop.permute.xlu0 %598
      %600 = vrot.lane.b32.xlu0 %v552, 126
      %v601 = vpop.permute.xlu0 %600
      %602 = vrot.lane.b32.xlu0 %v553, 126
      %v603 = vpop.permute.xlu0 %602
      %608 = vmatpush.bf16.msra.mxu0 0
      %609 = vmatpush.bf16.msra.mxu0 0
      %610 = vmatpush.bf16.msra.mxu0 0
      %611 = vmatpush.bf16.msra.mxu0 0
      %612 = vmatpush.bf16.msra.mxu0 %v603
      %613 = vmatpush.bf16.msra.mxu0 %v601
      %614 = vmatpush.bf16.msra.mxu0 %v599
      %615 = vmatpush.bf16.msra.mxu0 %v597
      %616 = vmatmul.bf16.gmra.mxu0 %v328
      %v617 = vpop.f32.mrf.mxu0
      %v618 = vadd.f32 0.0, %v617
      %v619 = vpop.f32.mrf.mxu0
      %620 = vdwg.mxu0
      %v621 = vadd.f32 %v593, %v618
      %622 = vrot.lane.b32.xlu0 %v550, 125
      %v623 = vpop.permute.xlu0 %622
      %624 = vrot.lane.b32.xlu0 %v551, 125
      %v625 = vpop.permute.xlu0 %624
      %626 = vrot.lane.b32.xlu0 %v552, 125
      %v627 = vpop.permute.xlu0 %626
      %628 = vrot.lane.b32.xlu0 %v553, 125
      %v629 = vpop.permute.xlu0 %628
      %634 = vmatpush.bf16.msra.mxu0 0
      %635 = vmatpush.bf16.msra.mxu0 0
      %636 = vmatpush.bf16.msra.mxu0 0
      %637 = vmatpush.bf16.msra.mxu0 0
      %638 = vmatpush.bf16.msra.mxu0 %v629
      %639 = vmatpush.bf16.msra.mxu0 %v627
      %640 = vmatpush.bf16.msra.mxu0 %v625
      %641 = vmatpush.bf16.msra.mxu0 %v623
      %642 = vmatmul.bf16.gmra.mxu0 %v357
      %v643 = vpop.f32.mrf.mxu0
      %v644 = vadd.f32 0.0, %v643
      %v645 = vpop.f32.mrf.mxu0
      %646 = vdwg.mxu0
      %v647 = vadd.f32 %v621, %v644
      %v648 = vadd.f32 %v647, %v376
      %v649 = vmax.f32 %v648, 0.0
      %650 = vst.msk [vmem:[#allocation2 + $0x10] sm:$0xff] %vm380, %v649
      %s651 = sadd.s32 %s227, 2
      %p652 = scmp.gt.s32.totalorder %s651, 0
      %s653 = scalar_select %p652, %s651, 0
      %p654 = scmp.lt.s32.totalorder %s653, 7
      %s655 = scalar_select %p654, %s653, 7
      %s656 = smul.u32 %s655, 16
      %s657 = sshra.s32 %s656, 3
      %s658 = sand.u32 %s656, 7
      %s659 = smul.addr %s657, 4
      %s660 = scalar_lea.vmem %s209, %s659
      %v661 = vld [vmem:[%s660] sm:$0xf]
      %v662 = vld [vmem:[%s660 + $0x4] sm:$0xf]
      %v663 = vld [vmem:[%s660 + $0x8] sm:$0xf]
      %v664 = vld [vmem:[%s660 + $0xc] sm:$0xf]
      %v665 = vld [vmem:[%s660 + $0x10] sm:$0xf]
      %v666 = vld [vmem:[%s660 + $0x14] sm:$0xf]
      %v667 = vld [vmem:[%s660 + $0x18] sm:$0xf]
      %v668 = vld [vmem:[%s660 + $0x1c] sm:$0xf]
      %v677 = vunpack.c.l.b16 %v661
      %v678 = vunpack.c.l.b16 %v662
      %v679 = vunpack.c.l.b16 %v663
      %v680 = vunpack.c.l.b16 %v664
      %v681 = vunpack.c.l.b16 %v665
      %v682 = vunpack.c.l.b16 %v666
      %v683 = vunpack.c.l.b16 %v667
      %v684 = vunpack.c.l.b16 %v668
      %v685 = vpack.c.b16 %v678, %v677
      %v686 = vpack.c.b16 %v680, %v679
      %v687 = vpack.c.b16 %v682, %v681
      %v688 = vpack.c.b16 %v684, %v683
      %689 = vrot.lane.b32.xlu0 %v685, 127
      %v690 = vpop.permute.xlu0 %689
      %691 = vrot.lane.b32.xlu0 %v686, 127
      %v692 = vpop.permute.xlu0 %691
      %693 = vrot.lane.b32.xlu0 %v687, 127
      %v694 = vpop.permute.xlu0 %693
      %695 = vrot.lane.b32.xlu0 %v688, 127
      %v696 = vpop.permute.xlu0 %695
      %701 = vmatpush.bf16.msra.mxu0 0
      %702 = vmatpush.bf16.msra.mxu0 0
      %703 = vmatpush.bf16.msra.mxu0 0
      %704 = vmatpush.bf16.msra.mxu0 0
      %705 = vmatpush.bf16.msra.mxu0 %v696
      %706 = vmatpush.bf16.msra.mxu0 %v694
      %707 = vmatpush.bf16.msra.mxu0 %v692
      %708 = vmatpush.bf16.msra.mxu0 %v690
      %709 = vmatmul.bf16.gmra.mxu0 %v280
      %v710 = vpop.f32.mrf.mxu0
      %v711 = vadd.f32 0.0, %v710
      %v712 = vpop.f32.mrf.mxu0
      %713 = vdwg.mxu0
      %718 = vmatpush.bf16.msra.mxu0 0
      %719 = vmatpush.bf16.msra.mxu0 0
      %720 = vmatpush.bf16.msra.mxu0 0
      %721 = vmatpush.bf16.msra.mxu0 0
      %722 = vmatpush.bf16.msra.mxu0 %v688
      %723 = vmatpush.bf16.msra.mxu0 %v687
      %724 = vmatpush.bf16.msra.mxu0 %v686
      %725 = vmatpush.bf16.msra.mxu0 %v685
      %726 = vmatmul.bf16.gmra.mxu0 %v300
      %v727 = vpop.f32.mrf.mxu0
      %v728 = vadd.f32 %v711, %v727
      %v729 = vpop.f32.mrf.mxu0
      %730 = vdwg.mxu0
      %731 = vrot.lane.b32.xlu0 %v685, 126
      %v732 = vpop.permute.xlu0 %731
      %733 = vrot.lane.b32.xlu0 %v686, 126
      %v734 = vpop.permute.xlu0 %733
      %735 = vrot.lane.b32.xlu0 %v687, 126
      %v736 = vpop.permute.xlu0 %735
      %737 = vrot.lane.b32.xlu0 %v688, 126
      %v738 = vpop.permute.xlu0 %737
      %743 = vmatpush.bf16.msra.mxu0 0
      %744 = vmatpush.bf16.msra.mxu0 0
      %745 = vmatpush.bf16.msra.mxu0 0
      %746 = vmatpush.bf16.msra.mxu0 0
      %747 = vmatpush.bf16.msra.mxu0 %v738
      %748 = vmatpush.bf16.msra.mxu0 %v736
      %749 = vmatpush.bf16.msra.mxu0 %v734
      %750 = vmatpush.bf16.msra.mxu0 %v732
      %751 = vmatmul.bf16.gmra.mxu0 %v328
      %v752 = vpop.f32.mrf.mxu0
      %v753 = vadd.f32 0.0, %v752
      %v754 = vpop.f32.mrf.mxu0
      %755 = vdwg.mxu0
      %v756 = vadd.f32 %v728, %v753
      %757 = vrot.lane.b32.xlu0 %v685, 125
      %v758 = vpop.permute.xlu0 %757
      %759 = vrot.lane.b32.xlu0 %v686, 125
      %v760 = vpop.permute.xlu0 %759
      %761 = vrot.lane.b32.xlu0 %v687, 125
      %v762 = vpop.permute.xlu0 %761
      %763 = vrot.lane.b32.xlu0 %v688, 125
      %v764 = vpop.permute.xlu0 %763
      %769 = vmatpush.bf16.msra.mxu0 0
      %770 = vmatpush.bf16.msra.mxu0 0
      %771 = vmatpush.bf16.msra.mxu0 0
      %772 = vmatpush.bf16.msra.mxu0 0
      %773 = vmatpush.bf16.msra.mxu0 %v764
      %774 = vmatpush.bf16.msra.mxu0 %v762
      %775 = vmatpush.bf16.msra.mxu0 %v760
      %776 = vmatpush.bf16.msra.mxu0 %v758
      %777 = vmatmul.bf16.gmra.mxu0 %v357
      %v778 = vpop.f32.mrf.mxu0
      %v779 = vadd.f32 0.0, %v778
      %v780 = vpop.f32.mrf.mxu0
      %781 = vdwg.mxu0
      %v782 = vadd.f32 %v756, %v779
      %v783 = vadd.f32 %v782, %v376
      %v784 = vmax.f32 %v783, 0.0
      %785 = vst.msk [vmem:[#allocation2 + $0x18] sm:$0xff] %vm380, %v784
      %s786 = sadd.s32 %s227, 3
      %p787 = scmp.gt.s32.totalorder %s786, 0
      %s788 = scalar_select %p787, %s786, 0
      %p789 = scmp.lt.s32.totalorder %s788, 7
      %s790 = scalar_select %p789, %s788, 7
      %s791 = smul.u32 %s790, 16
      %s792 = sshra.s32 %s791, 3
      %s793 = sand.u32 %s791, 7
      %s794 = smul.addr %s792, 4
      %s795 = scalar_lea.vmem %s209, %s794
      %v796 = vld [vmem:[%s795] sm:$0xf]
      %v797 = vld [vmem:[%s795 + $0x4] sm:$0xf]
      %v798 = vld [vmem:[%s795 + $0x8] sm:$0xf]
      %v799 = vld [vmem:[%s795 + $0xc] sm:$0xf]
      %v800 = vld [vmem:[%s795 + $0x10] sm:$0xf]
      %v801 = vld [vmem:[%s795 + $0x14] sm:$0xf]
      %v802 = vld [vmem:[%s795 + $0x18] sm:$0xf]
      %v803 = vld [vmem:[%s795 + $0x1c] sm:$0xf]
      %v812 = vunpack.c.l.b16 %v796
      %v813 = vunpack.c.l.b16 %v797
      %v814 = vunpack.c.l.b16 %v798
      %v815 = vunpack.c.l.b16 %v799
      %v816 = vunpack.c.l.b16 %v800
      %v817 = vunpack.c.l.b16 %v801
      %v818 = vunpack.c.l.b16 %v802
      %v819 = vunpack.c.l.b16 %v803
      %v820 = vpack.c.b16 %v813, %v812
      %v821 = vpack.c.b16 %v815, %v814
      %v822 = vpack.c.b16 %v817, %v816
      %v823 = vpack.c.b16 %v819, %v818
      %824 = vrot.lane.b32.xlu0 %v820, 127
      %v825 = vpop.permute.xlu0 %824
      %826 = vrot.lane.b32.xlu0 %v821, 127
      %v827 = vpop.permute.xlu0 %826
      %828 = vrot.lane.b32.xlu0 %v822, 127
      %v829 = vpop.permute.xlu0 %828
      %830 = vrot.lane.b32.xlu0 %v823, 127
      %v831 = vpop.permute.xlu0 %830
      %836 = vmatpush.bf16.msra.mxu0 0
      %837 = vmatpush.bf16.msra.mxu0 0
      %838 = vmatpush.bf16.msra.mxu0 0
      %839 = vmatpush.bf16.msra.mxu0 0
      %840 = vmatpush.bf16.msra.mxu0 %v831
      %841 = vmatpush.bf16.msra.mxu0 %v829
      %842 = vmatpush.bf16.msra.mxu0 %v827
      %843 = vmatpush.bf16.msra.mxu0 %v825
      %844 = vmatmul.bf16.gmra.mxu0 %v280
      %v845 = vpop.f32.mrf.mxu0
      %v846 = vadd.f32 0.0, %v845
      %v847 = vpop.f32.mrf.mxu0
      %848 = vdwg.mxu0
      %853 = vmatpush.bf16.msra.mxu0 0
      %854 = vmatpush.bf16.msra.mxu0 0
      %855 = vmatpush.bf16.msra.mxu0 0
      %856 = vmatpush.bf16.msra.mxu0 0
      %857 = vmatpush.bf16.msra.mxu0 %v823
      %858 = vmatpush.bf16.msra.mxu0 %v822
      %859 = vmatpush.bf16.msra.mxu0 %v821
      %860 = vmatpush.bf16.msra.mxu0 %v820
      %861 = vmatmul.bf16.gmra.mxu0 %v300
      %v862 = vpop.f32.mrf.mxu0
      %v863 = vadd.f32 %v846, %v862
      %v864 = vpop.f32.mrf.mxu0
      %865 = vdwg.mxu0
      %866 = vrot.lane.b32.xlu0 %v820, 126
      %v867 = vpop.permute.xlu0 %866
      %868 = vrot.lane.b32.xlu0 %v821, 126
      %v869 = vpop.permute.xlu0 %868
      %870 = vrot.lane.b32.xlu0 %v822, 126
      %v871 = vpop.permute.xlu0 %870
      %872 = vrot.lane.b32.xlu0 %v823, 126
      %v873 = vpop.permute.xlu0 %872
      %878 = vmatpush.bf16.msra.mxu0 0
      %879 = vmatpush.bf16.msra.mxu0 0
      %880 = vmatpush.bf16.msra.mxu0 0
      %881 = vmatpush.bf16.msra.mxu0 0
      %882 = vmatpush.bf16.msra.mxu0 %v873
      %883 = vmatpush.bf16.msra.mxu0 %v871
      %884 = vmatpush.bf16.msra.mxu0 %v869
      %885 = vmatpush.bf16.msra.mxu0 %v867
      %886 = vmatmul.bf16.gmra.mxu0 %v328
      %v887 = vpop.f32.mrf.mxu0
      %v888 = vadd.f32 0.0, %v887
      %v889 = vpop.f32.mrf.mxu0
      %890 = vdwg.mxu0
      %v891 = vadd.f32 %v863, %v888
      %892 = vrot.lane.b32.xlu0 %v820, 125
      %v893 = vpop.permute.xlu0 %892
      %894 = vrot.lane.b32.xlu0 %v821, 125
      %v895 = vpop.permute.xlu0 %894
      %896 = vrot.lane.b32.xlu0 %v822, 125
      %v897 = vpop.permute.xlu0 %896
      %898 = vrot.lane.b32.xlu0 %v823, 125
      %v899 = vpop.permute.xlu0 %898
      %904 = vmatpush.bf16.msra.mxu0 0
      %905 = vmatpush.bf16.msra.mxu0 0
      %906 = vmatpush.bf16.msra.mxu0 0
      %907 = vmatpush.bf16.msra.mxu0 0
      %908 = vmatpush.bf16.msra.mxu0 %v899
      %909 = vmatpush.bf16.msra.mxu0 %v897
      %910 = vmatpush.bf16.msra.mxu0 %v895
      %911 = vmatpush.bf16.msra.mxu0 %v893
      %912 = vmatmul.bf16.gmra.mxu0 %v357
      %v913 = vpop.f32.mrf.mxu0
      %v914 = vadd.f32 0.0, %v913
      %v915 = vpop.f32.mrf.mxu0
      %916 = vdwg.mxu0
      %v917 = vadd.f32 %v891, %v914
      %v918 = vadd.f32 %v917, %v376
      %v919 = vmax.f32 %v918, 0.0
      %920 = vst.msk [vmem:[#allocation2 + $0x20] sm:$0xff] %vm380, %v919
      %s921 = sadd.s32 %s227, 4
      %p922 = scmp.gt.s32.totalorder %s921, 0
      %s923 = scalar_select %p922, %s921, 0
      %p924 = scmp.lt.s32.totalorder %s923, 7
      %s925 = scalar_select %p924, %s923, 7
      %s926 = smul.u32 %s925, 16
      %s927 = sshra.s32 %s926, 3
      %s928 = sand.u32 %s926, 7
      %s929 = smul.addr %s927, 4
      %s930 = scalar_lea.vmem %s209, %s929
      %v931 = vld [vmem:[%s930] sm:$0xf]
      %v932 = vld [vmem:[%s930 + $0x4] sm:$0xf]
      %v933 = vld [vmem:[%s930 + $0x8] sm:$0xf]
      %v934 = vld [vmem:[%s930 + $0xc] sm:$0xf]
      %v935 = vld [vmem:[%s930 + $0x10] sm:$0xf]
      %v936 = vld [vmem:[%s930 + $0x14] sm:$0xf]
      %v937 = vld [vmem:[%s930 + $0x18] sm:$0xf]
      %v938 = vld [vmem:[%s930 + $0x1c] sm:$0xf]
      %v947 = vunpack.c.l.b16 %v931
      %v948 = vunpack.c.l.b16 %v932
      %v949 = vunpack.c.l.b16 %v933
      %v950 = vunpack.c.l.b16 %v934
      %v951 = vunpack.c.l.b16 %v935
      %v952 = vunpack.c.l.b16 %v936
      %v953 = vunpack.c.l.b16 %v937
      %v954 = vunpack.c.l.b16 %v938
      %v955 = vpack.c.b16 %v948, %v947
      %v956 = vpack.c.b16 %v950, %v949
      %v957 = vpack.c.b16 %v952, %v951
      %v958 = vpack.c.b16 %v954, %v953
      %959 = vrot.lane.b32.xlu0 %v955, 127
      %v960 = vpop.permute.xlu0 %959
      %961 = vrot.lane.b32.xlu0 %v956, 127
      %v962 = vpop.permute.xlu0 %961
      %963 = vrot.lane.b32.xlu0 %v957, 127
      %v964 = vpop.permute.xlu0 %963
      %965 = vrot.lane.b32.xlu0 %v958, 127
      %v966 = vpop.permute.xlu0 %965
      %971 = vmatpush.bf16.msra.mxu0 0
      %972 = vmatpush.bf16.msra.mxu0 0
      %973 = vmatpush.bf16.msra.mxu0 0
      %974 = vmatpush.bf16.msra.mxu0 0
      %975 = vmatpush.bf16.msra.mxu0 %v966
      %976 = vmatpush.bf16.msra.mxu0 %v964
      %977 = vmatpush.bf16.msra.mxu0 %v962
      %978 = vmatpush.bf16.msra.mxu0 %v960
      %979 = vmatmul.bf16.gmra.mxu0 %v280
      %v980 = vpop.f32.mrf.mxu0
      %v981 = vadd.f32 0.0, %v980
      %v982 = vpop.f32.mrf.mxu0
      %983 = vdwg.mxu0
      %988 = vmatpush.bf16.msra.mxu0 0
      %989 = vmatpush.bf16.msra.mxu0 0
      %990 = vmatpush.bf16.msra.mxu0 0
      %991 = vmatpush.bf16.msra.mxu0 0
      %992 = vmatpush.bf16.msra.mxu0 %v958
      %993 = vmatpush.bf16.msra.mxu0 %v957
      %994 = vmatpush.bf16.msra.mxu0 %v956
      %995 = vmatpush.bf16.msra.mxu0 %v955
      %996 = vmatmul.bf16.gmra.mxu0 %v300
      %v997 = vpop.f32.mrf.mxu0
      %v998 = vadd.f32 %v981, %v997
      %v999 = vpop.f32.mrf.mxu0
      %1000 = vdwg.mxu0
      %1001 = vrot.lane.b32.xlu0 %v955, 126
      %v1002 = vpop.permute.xlu0 %1001
      %1003 = vrot.lane.b32.xlu0 %v956, 126
      %v1004 = vpop.permute.xlu0 %1003
      %1005 = vrot.lane.b32.xlu0 %v957, 126
      %v1006 = vpop.permute.xlu0 %1005
      %1007 = vrot.lane.b32.xlu0 %v958, 126
      %v1008 = vpop.permute.xlu0 %1007
      %1013 = vmatpush.bf16.msra.mxu0 0
      %1014 = vmatpush.bf16.msra.mxu0 0
      %1015 = vmatpush.bf16.msra.mxu0 0
      %1016 = vmatpush.bf16.msra.mxu0 0
      %1017 = vmatpush.bf16.msra.mxu0 %v1008
      %1018 = vmatpush.bf16.msra.mxu0 %v1006
      %1019 = vmatpush.bf16.msra.mxu0 %v1004
      %1020 = vmatpush.bf16.msra.mxu0 %v1002
      %1021 = vmatmul.bf16.gmra.mxu0 %v328
      %v1022 = vpop.f32.mrf.mxu0
      %v1023 = vadd.f32 0.0, %v1022
      %v1024 = vpop.f32.mrf.mxu0
      %1025 = vdwg.mxu0
      %v1026 = vadd.f32 %v998, %v1023
      %1027 = vrot.lane.b32.xlu0 %v955, 125
      %v1028 = vpop.permute.xlu0 %1027
      %1029 = vrot.lane.b32.xlu0 %v956, 125
      %v1030 = vpop.permute.xlu0 %1029
      %1031 = vrot.lane.b32.xlu0 %v957, 125
      %v1032 = vpop.permute.xlu0 %1031
      %1033 = vrot.lane.b32.xlu0 %v958, 125
      %v1034 = vpop.permute.xlu0 %1033
      %1039 = vmatpush.bf16.msra.mxu0 0
      %1040 = vmatpush.bf16.msra.mxu0 0
      %1041 = vmatpush.bf16.msra.mxu0 0
      %1042 = vmatpush.bf16.msra.mxu0 0
      %1043 = vmatpush.bf16.msra.mxu0 %v1034
      %1044 = vmatpush.bf16.msra.mxu0 %v1032
      %1045 = vmatpush.bf16.msra.mxu0 %v1030
      %1046 = vmatpush.bf16.msra.mxu0 %v1028
      %1047 = vmatmul.bf16.gmra.mxu0 %v357
      %v1048 = vpop.f32.mrf.mxu0
      %v1049 = vadd.f32 0.0, %v1048
      %v1050 = vpop.f32.mrf.mxu0
      %1051 = vdwg.mxu0
      %v1052 = vadd.f32 %v1026, %v1049
      %v1053 = vadd.f32 %v1052, %v376
      %v1054 = vmax.f32 %v1053, 0.0
      %1055 = vst.msk [vmem:[#allocation2 + $0x28] sm:$0xff] %vm380, %v1054
      %s1056 = sadd.s32 %s227, 5
      %p1057 = scmp.gt.s32.totalorder %s1056, 0
      %s1058 = scalar_select %p1057, %s1056, 0
      %p1059 = scmp.lt.s32.totalorder %s1058, 7
      %s1060 = scalar_select %p1059, %s1058, 7
      %s1061 = smul.u32 %s1060, 16
      %s1062 = sshra.s32 %s1061, 3
      %s1063 = sand.u32 %s1061, 7
      %s1064 = smul.addr %s1062, 4
      %s1065 = scalar_lea.vmem %s209, %s1064
      %v1066 = vld [vmem:[%s1065] sm:$0xf]
      %v1067 = vld [vmem:[%s1065 + $0x4] sm:$0xf]
      %v1068 = vld [vmem:[%s1065 + $0x8] sm:$0xf]
      %v1069 = vld [vmem:[%s1065 + $0xc] sm:$0xf]
      %v1070 = vld [vmem:[%s1065 + $0x10] sm:$0xf]
      %v1071 = vld [vmem:[%s1065 + $0x14] sm:$0xf]
      %v1072 = vld [vmem:[%s1065 + $0x18] sm:$0xf]
      %v1073 = vld [vmem:[%s1065 + $0x1c] sm:$0xf]
      %v1082 = vunpack.c.l.b16 %v1066
      %v1083 = vunpack.c.l.b16 %v1067
      %v1084 = vunpack.c.l.b16 %v1068
      %v1085 = vunpack.c.l.b16 %v1069
      %v1086 = vunpack.c.l.b16 %v1070
      %v1087 = vunpack.c.l.b16 %v1071
      %v1088 = vunpack.c.l.b16 %v1072
      %v1089 = vunpack.c.l.b16 %v1073
      %v1090 = vpack.c.b16 %v1083, %v1082
      %v1091 = vpack.c.b16 %v1085, %v1084
      %v1092 = vpack.c.b16 %v1087, %v1086
      %v1093 = vpack.c.b16 %v1089, %v1088
      %1094 = vrot.lane.b32.xlu0 %v1090, 127
      %v1095 = vpop.permute.xlu0 %1094
      %1096 = vrot.lane.b32.xlu0 %v1091, 127
      %v1097 = vpop.permute.xlu0 %1096
      %1098 = vrot.lane.b32.xlu0 %v1092, 127
      %v1099 = vpop.permute.xlu0 %1098
      %1100 = vrot.lane.b32.xlu0 %v1093, 127
      %v1101 = vpop.permute.xlu0 %1100
      %1106 = vmatpush.bf16.msra.mxu0 0
      %1107 = vmatpush.bf16.msra.mxu0 0
      %1108 = vmatpush.bf16.msra.mxu0 0
      %1109 = vmatpush.bf16.msra.mxu0 0
      %1110 = vmatpush.bf16.msra.mxu0 %v1101
      %1111 = vmatpush.bf16.msra.mxu0 %v1099
      %1112 = vmatpush.bf16.msra.mxu0 %v1097
      %1113 = vmatpush.bf16.msra.mxu0 %v1095
      %1114 = vmatmul.bf16.gmra.mxu0 %v280
      %v1115 = vpop.f32.mrf.mxu0
      %v1116 = vadd.f32 0.0, %v1115
      %v1117 = vpop.f32.mrf.mxu0
      %1118 = vdwg.mxu0
      %1123 = vmatpush.bf16.msra.mxu0 0
      %1124 = vmatpush.bf16.msra.mxu0 0
      %1125 = vmatpush.bf16.msra.mxu0 0
      %1126 = vmatpush.bf16.msra.mxu0 0
      %1127 = vmatpush.bf16.msra.mxu0 %v1093
      %1128 = vmatpush.bf16.msra.mxu0 %v1092
      %1129 = vmatpush.bf16.msra.mxu0 %v1091
      %1130 = vmatpush.bf16.msra.mxu0 %v1090
      %1131 = vmatmul.bf16.gmra.mxu0 %v300
      %v1132 = vpop.f32.mrf.mxu0
      %v1133 = vadd.f32 %v1116, %v1132
      %v1134 = vpop.f32.mrf.mxu0
      %1135 = vdwg.mxu0
      %1136 = vrot.lane.b32.xlu0 %v1090, 126
      %v1137 = vpop.permute.xlu0 %1136
      %1138 = vrot.lane.b32.xlu0 %v1091, 126
      %v1139 = vpop.permute.xlu0 %1138
      %1140 = vrot.lane.b32.xlu0 %v1092, 126
      %v1141 = vpop.permute.xlu0 %1140
      %1142 = vrot.lane.b32.xlu0 %v1093, 126
      %v1143 = vpop.permute.xlu0 %1142
      %1148 = vmatpush.bf16.msra.mxu0 0
      %1149 = vmatpush.bf16.msra.mxu0 0
      %1150 = vmatpush.bf16.msra.mxu0 0
      %1151 = vmatpush.bf16.msra.mxu0 0
      %1152 = vmatpush.bf16.msra.mxu0 %v1143
      %1153 = vmatpush.bf16.msra.mxu0 %v1141
      %1154 = vmatpush.bf16.msra.mxu0 %v1139
      %1155 = vmatpush.bf16.msra.mxu0 %v1137
      %1156 = vmatmul.bf16.gmra.mxu0 %v328
      %v1157 = vpop.f32.mrf.mxu0
      %v1158 = vadd.f32 0.0, %v1157
      %v1159 = vpop.f32.mrf.mxu0
      %1160 = vdwg.mxu0
      %v1161 = vadd.f32 %v1133, %v1158
      %1162 = vrot.lane.b32.xlu0 %v1090, 125
      %v1163 = vpop.permute.xlu0 %1162
      %1164 = vrot.lane.b32.xlu0 %v1091, 125
      %v1165 = vpop.permute.xlu0 %1164
      %1166 = vrot.lane.b32.xlu0 %v1092, 125
      %v1167 = vpop.permute.xlu0 %1166
      %1168 = vrot.lane.b32.xlu0 %v1093, 125
      %v1169 = vpop.permute.xlu0 %1168
      %1174 = vmatpush.bf16.msra.mxu0 0
      %1175 = vmatpush.bf16.msra.mxu0 0
      %1176 = vmatpush.bf16.msra.mxu0 0
      %1177 = vmatpush.bf16.msra.mxu0 0
      %1178 = vmatpush.bf16.msra.mxu0 %v1169
      %1179 = vmatpush.bf16.msra.mxu0 %v1167
      %1180 = vmatpush.bf16.msra.mxu0 %v1165
      %1181 = vmatpush.bf16.msra.mxu0 %v1163
      %1182 = vmatmul.bf16.gmra.mxu0 %v357
      %v1183 = vpop.f32.mrf.mxu0
      %v1184 = vadd.f32 0.0, %v1183
      %v1185 = vpop.f32.mrf.mxu0
      %1186 = vdwg.mxu0
      %v1187 = vadd.f32 %v1161, %v1184
      %v1188 = vadd.f32 %v1187, %v376
      %v1189 = vmax.f32 %v1188, 0.0
      %1190 = vst.msk [vmem:[#allocation2 + $0x30] sm:$0xff] %vm380, %v1189
      %s1191 = sadd.s32 %s227, 6
      %p1192 = scmp.gt.s32.totalorder %s1191, 0
      %s1193 = scalar_select %p1192, %s1191, 0
      %p1194 = scmp.lt.s32.totalorder %s1193, 7
      %s1195 = scalar_select %p1194, %s1193, 7
      %s1196 = smul.u32 %s1195, 16
      %s1197 = sshra.s32 %s1196, 3
      %s1198 = sand.u32 %s1196, 7
      %s1199 = smul.addr %s1197, 4
      %s1200 = scalar_lea.vmem %s209, %s1199
      %v1201 = vld [vmem:[%s1200] sm:$0xf]
      %v1202 = vld [vmem:[%s1200 + $0x4] sm:$0xf]
      %v1203 = vld [vmem:[%s1200 + $0x8] sm:$0xf]
      %v1204 = vld [vmem:[%s1200 + $0xc] sm:$0xf]
      %v1205 = vld [vmem:[%s1200 + $0x10] sm:$0xf]
      %v1206 = vld [vmem:[%s1200 + $0x14] sm:$0xf]
      %v1207 = vld [vmem:[%s1200 + $0x18] sm:$0xf]
      %v1208 = vld [vmem:[%s1200 + $0x1c] sm:$0xf]
      %v1217 = vunpack.c.l.b16 %v1201
      %v1218 = vunpack.c.l.b16 %v1202
      %v1219 = vunpack.c.l.b16 %v1203
      %v1220 = vunpack.c.l.b16 %v1204
      %v1221 = vunpack.c.l.b16 %v1205
      %v1222 = vunpack.c.l.b16 %v1206
      %v1223 = vunpack.c.l.b16 %v1207
      %v1224 = vunpack.c.l.b16 %v1208
      %v1225 = vpack.c.b16 %v1218, %v1217
      %v1226 = vpack.c.b16 %v1220, %v1219
      %v1227 = vpack.c.b16 %v1222, %v1221
      %v1228 = vpack.c.b16 %v1224, %v1223
      %1229 = vrot.lane.b32.xlu0 %v1225, 127
      %v1230 = vpop.permute.xlu0 %1229
      %1231 = vrot.lane.b32.xlu0 %v1226, 127
      %v1232 = vpop.permute.xlu0 %1231
      %1233 = vrot.lane.b32.xlu0 %v1227, 127
      %v1234 = vpop.permute.xlu0 %1233
      %1235 = vrot.lane.b32.xlu0 %v1228, 127
      %v1236 = vpop.permute.xlu0 %1235
      %1241 = vmatpush.bf16.msra.mxu0 0
      %1242 = vmatpush.bf16.msra.mxu0 0
      %1243 = vmatpush.bf16.msra.mxu0 0
      %1244 = vmatpush.bf16.msra.mxu0 0
      %1245 = vmatpush.bf16.msra.mxu0 %v1236
      %1246 = vmatpush.bf16.msra.mxu0 %v1234
      %1247 = vmatpush.bf16.msra.mxu0 %v1232
      %1248 = vmatpush.bf16.msra.mxu0 %v1230
      %1249 = vmatmul.bf16.gmra.mxu0 %v280
      %v1250 = vpop.f32.mrf.mxu0
      %v1251 = vadd.f32 0.0, %v1250
      %v1252 = vpop.f32.mrf.mxu0
      %1253 = vdwg.mxu0
      %1258 = vmatpush.bf16.msra.mxu0 0
      %1259 = vmatpush.bf16.msra.mxu0 0
      %1260 = vmatpush.bf16.msra.mxu0 0
      %1261 = vmatpush.bf16.msra.mxu0 0
      %1262 = vmatpush.bf16.msra.mxu0 %v1228
      %1263 = vmatpush.bf16.msra.mxu0 %v1227
      %1264 = vmatpush.bf16.msra.mxu0 %v1226
      %1265 = vmatpush.bf16.msra.mxu0 %v1225
      %1266 = vmatmul.bf16.gmra.mxu0 %v300
      %v1267 = vpop.f32.mrf.mxu0
      %v1268 = vadd.f32 %v1251, %v1267
      %v1269 = vpop.f32.mrf.mxu0
      %1270 = vdwg.mxu0
      %1271 = vrot.lane.b32.xlu0 %v1225, 126
      %v1272 = vpop.permute.xlu0 %1271
      %1273 = vrot.lane.b32.xlu0 %v1226, 126
      %v1274 = vpop.permute.xlu0 %1273
      %1275 = vrot.lane.b32.xlu0 %v1227, 126
      %v1276 = vpop.permute.xlu0 %1275
      %1277 = vrot.lane.b32.xlu0 %v1228, 126
      %v1278 = vpop.permute.xlu0 %1277
      %1283 = vmatpush.bf16.msra.mxu0 0
      %1284 = vmatpush.bf16.msra.mxu0 0
      %1285 = vmatpush.bf16.msra.mxu0 0
      %1286 = vmatpush.bf16.msra.mxu0 0
      %1287 = vmatpush.bf16.msra.mxu0 %v1278
      %1288 = vmatpush.bf16.msra.mxu0 %v1276
      %1289 = vmatpush.bf16.msra.mxu0 %v1274
      %1290 = vmatpush.bf16.msra.mxu0 %v1272
      %1291 = vmatmul.bf16.gmra.mxu0 %v328
      %v1292 = vpop.f32.mrf.mxu0
      %v1293 = vadd.f32 0.0, %v1292
      %v1294 = vpop.f32.mrf.mxu0
      %1295 = vdwg.mxu0
      %v1296 = vadd.f32 %v1268, %v1293
      %1297 = vrot.lane.b32.xlu0 %v1225, 125
      %v1298 = vpop.permute.xlu0 %1297
      %1299 = vrot.lane.b32.xlu0 %v1226, 125
      %v1300 = vpop.permute.xlu0 %1299
      %1301 = vrot.lane.b32.xlu0 %v1227, 125
      %v1302 = vpop.permute.xlu0 %1301
      %1303 = vrot.lane.b32.xlu0 %v1228, 125
      %v1304 = vpop.permute.xlu0 %1303
      %1309 = vmatpush.bf16.msra.mxu0 0
      %1310 = vmatpush.bf16.msra.mxu0 0
      %1311 = vmatpush.bf16.msra.mxu0 0
      %1312 = vmatpush.bf16.msra.mxu0 0
      %1313 = vmatpush.bf16.msra.mxu0 %v1304
      %1314 = vmatpush.bf16.msra.mxu0 %v1302
      %1315 = vmatpush.bf16.msra.mxu0 %v1300
      %1316 = vmatpush.bf16.msra.mxu0 %v1298
      %1317 = vmatmul.bf16.gmra.mxu0 %v357
      %v1318 = vpop.f32.mrf.mxu0
      %v1319 = vadd.f32 0.0, %v1318
      %v1320 = vpop.f32.mrf.mxu0
      %1321 = vdwg.mxu0
      %v1322 = vadd.f32 %v1296, %v1319
      %v1323 = vadd.f32 %v1322, %v376
      %v1324 = vmax.f32 %v1323, 0.0
      %1325 = vst.msk [vmem:[#allocation2 + $0x38] sm:$0xff] %vm380, %v1324
      %s1326 = sadd.s32 %s227, 7
      %p1327 = scmp.gt.s32.totalorder %s1326, 0
      %s1328 = scalar_select %p1327, %s1326, 0
      %p1329 = scmp.lt.s32.totalorder %s1328, 7
      %s1330 = scalar_select %p1329, %s1328, 7
      %s1331 = smul.u32 %s1330, 16
      %s1332 = sshra.s32 %s1331, 3
      %s1333 = sand.u32 %s1331, 7
      %s1334 = smul.addr %s1332, 4
      %s1335 = scalar_lea.vmem %s209, %s1334
      %v1336 = vld [vmem:[%s1335] sm:$0xf]
      %v1337 = vld [vmem:[%s1335 + $0x4] sm:$0xf]
      %v1338 = vld [vmem:[%s1335 + $0x8] sm:$0xf]
      %v1339 = vld [vmem:[%s1335 + $0xc] sm:$0xf]
      %v1340 = vld [vmem:[%s1335 + $0x10] sm:$0xf]
      %v1341 = vld [vmem:[%s1335 + $0x14] sm:$0xf]
      %v1342 = vld [vmem:[%s1335 + $0x18] sm:$0xf]
      %v1343 = vld [vmem:[%s1335 + $0x1c] sm:$0xf]
      %v1352 = vunpack.c.l.b16 %v1336
      %v1353 = vunpack.c.l.b16 %v1337
      %v1354 = vunpack.c.l.b16 %v1338
      %v1355 = vunpack.c.l.b16 %v1339
      %v1356 = vunpack.c.l.b16 %v1340
      %v1357 = vunpack.c.l.b16 %v1341
      %v1358 = vunpack.c.l.b16 %v1342
      %v1359 = vunpack.c.l.b16 %v1343
      %v1360 = vpack.c.b16 %v1353, %v1352
      %v1361 = vpack.c.b16 %v1355, %v1354
      %v1362 = vpack.c.b16 %v1357, %v1356
      %v1363 = vpack.c.b16 %v1359, %v1358
      %1364 = vrot.lane.b32.xlu0 %v1360, 127
      %v1365 = vpop.permute.xlu0 %1364
      %1366 = vrot.lane.b32.xlu0 %v1361, 127
      %v1367 = vpop.permute.xlu0 %1366
      %1368 = vrot.lane.b32.xlu0 %v1362, 127
      %v1369 = vpop.permute.xlu0 %1368
      %1370 = vrot.lane.b32.xlu0 %v1363, 127
      %v1371 = vpop.permute.xlu0 %1370
      %1376 = vmatpush.bf16.msra.mxu0 0
      %1377 = vmatpush.bf16.msra.mxu0 0
      %1378 = vmatpush.bf16.msra.mxu0 0
      %1379 = vmatpush.bf16.msra.mxu0 0
      %1380 = vmatpush.bf16.msra.mxu0 %v1371
      %1381 = vmatpush.bf16.msra.mxu0 %v1369
      %1382 = vmatpush.bf16.msra.mxu0 %v1367
      %1383 = vmatpush.bf16.msra.mxu0 %v1365
      %1384 = vmatmul.bf16.gmra.mxu0 %v280
      %v1385 = vpop.f32.mrf.mxu0
      %v1386 = vadd.f32 0.0, %v1385
      %v1387 = vpop.f32.mrf.mxu0
      %1388 = vdwg.mxu0
      %1393 = vmatpush.bf16.msra.mxu0 0
      %1394 = vmatpush.bf16.msra.mxu0 0
      %1395 = vmatpush.bf16.msra.mxu0 0
      %1396 = vmatpush.bf16.msra.mxu0 0
      %1397 = vmatpush.bf16.msra.mxu0 %v1363
      %1398 = vmatpush.bf16.msra.mxu0 %v1362
      %1399 = vmatpush.bf16.msra.mxu0 %v1361
      %1400 = vmatpush.bf16.msra.mxu0 %v1360
      %1401 = vmatmul.bf16.gmra.mxu0 %v300
      %v1402 = vpop.f32.mrf.mxu0
      %v1403 = vadd.f32 %v1386, %v1402
      %v1404 = vpop.f32.mrf.mxu0
      %1405 = vdwg.mxu0
      %1406 = vrot.lane.b32.xlu0 %v1360, 126
      %v1407 = vpop.permute.xlu0 %1406
      %1408 = vrot.lane.b32.xlu0 %v1361, 126
      %v1409 = vpop.permute.xlu0 %1408
      %1410 = vrot.lane.b32.xlu0 %v1362, 126
      %v1411 = vpop.permute.xlu0 %1410
      %1412 = vrot.lane.b32.xlu0 %v1363, 126
      %v1413 = vpop.permute.xlu0 %1412
      %1418 = vmatpush.bf16.msra.mxu0 0
      %1419 = vmatpush.bf16.msra.mxu0 0
      %1420 = vmatpush.bf16.msra.mxu0 0
      %1421 = vmatpush.bf16.msra.mxu0 0
      %1422 = vmatpush.bf16.msra.mxu0 %v1413
      %1423 = vmatpush.bf16.msra.mxu0 %v1411
      %1424 = vmatpush.bf16.msra.mxu0 %v1409
      %1425 = vmatpush.bf16.msra.mxu0 %v1407
      %1426 = vmatmul.bf16.gmra.mxu0 %v328
      %v1427 = vpop.f32.mrf.mxu0
      %v1428 = vadd.f32 0.0, %v1427
      %v1429 = vpop.f32.mrf.mxu0
      %1430 = vdwg.mxu0
      %v1431 = vadd.f32 %v1403, %v1428
      %1432 = vrot.lane.b32.xlu0 %v1360, 125
      %v1433 = vpop.permute.xlu0 %1432
      %1434 = vrot.lane.b32.xlu0 %v1361, 125
      %v1435 = vpop.permute.xlu0 %1434
      %1436 = vrot.lane.b32.xlu0 %v1362, 125
      %v1437 = vpop.permute.xlu0 %1436
      %1438 = vrot.lane.b32.xlu0 %v1363, 125
      %v1439 = vpop.permute.xlu0 %1438
      %1444 = vmatpush.bf16.msra.mxu0 0
      %1445 = vmatpush.bf16.msra.mxu0 0
      %1446 = vmatpush.bf16.msra.mxu0 0
      %1447 = vmatpush.bf16.msra.mxu0 0
      %1448 = vmatpush.bf16.msra.mxu0 %v1439
      %1449 = vmatpush.bf16.msra.mxu0 %v1437
      %1450 = vmatpush.bf16.msra.mxu0 %v1435
      %1451 = vmatpush.bf16.msra.mxu0 %v1433
      %1452 = vmatmul.bf16.gmra.mxu0 %v357
      %v1453 = vpop.f32.mrf.mxu0
      %v1454 = vadd.f32 0.0, %v1453
      %v1455 = vpop.f32.mrf.mxu0
      %1456 = vdwg.mxu0
      %v1457 = vadd.f32 %v1431, %v1454
      %v1458 = vadd.f32 %v1457, %v376
      %v1459 = vmax.f32 %v1458, 0.0
      %1460 = vst.msk [vmem:[#allocation2 + $0x40] sm:$0xff] %vm380, %v1459
      %v1461 = vld [vmem:[#allocation2] sm:$0xff]
      %v1462 = vld [vmem:[#allocation2 + $0x8] sm:$0xff]
      %v1463 = vld [vmem:[#allocation2 + $0x10] sm:$0xff]
      %v1464 = vld [vmem:[#allocation2 + $0x18] sm:$0xff]
      %v1465 = vld [vmem:[#allocation2 + $0x20] sm:$0xff]
      %v1466 = vld [vmem:[#allocation2 + $0x28] sm:$0xff]
      %v1467 = vld [vmem:[#allocation2 + $0x30] sm:$0xff]
      %v1468 = vld [vmem:[#allocation2 + $0x38] sm:$0xff]
      %v1469 = vld [vmem:[#allocation2 + $0x40] sm:$0xff]
      %v1470 = vld [vmem:[%s3] sm:$0xff]
      %v1472 = vsel %vm380, %v1461, 0
      %v1475 = vsel %vm380, %v1462, 0
      %v1478 = vsel %vm380, %v1463, 0
      %v1481 = vsel %vm380, %v1464, 0
      %v1484 = vsel %vm380, %v1465, 0
      %v1487 = vsel %vm380, %v1466, 0
      %v1490 = vsel %vm380, %v1467, 0
      %v1493 = vsel %vm380, %v1468, 0
      %v1496 = vsel %vm380, %v1469, 0
      %1498 = vmatpush.msra.mxu0 0.0
      %1499 = vmatpush.msra.mxu0 0.0
      %1500 = vmatpush.msra.mxu0 0.0
      %1501 = vmatpush.msra.mxu0 0.0
      %1502 = vmatpush.msra.mxu0 0.0
      %1503 = vmatpush.msra.mxu0 0.0
      %1504 = vmatpush.msra.mxu0 0.0
      %1505 = vmatpush.msra.mxu0 0.0
      %1506 = vmatpush.msra.mxu0 0.0
      %1507 = vmatpush.msra.mxu0 0.0
      %1508 = vmatpush.msra.mxu0 0.0
      %1509 = vmatpush.msra.mxu0 0.0
      %1510 = vmatpush.msra.mxu0 0.0
      %1511 = vmatpush.msra.mxu0 0.0
      %1512 = vmatpush.msra.mxu0 0.0
      %1513 = vmatpush.msra.mxu0 %v1470
      %1514 = vmatmul.f32.gmra.mxu0 %v1472
      %v1515 = vpop.f32.mrf.mxu0
      %v1516 = vadd.f32 0.0, %v1515
      %1517 = vmatmul.f32.gmra.mxu0 %v1475
      %v1518 = vpop.f32.mrf.mxu0
      %v1519 = vadd.f32 0.0, %v1518
      %1520 = vmatmul.f32.gmra.mxu0 %v1478
      %v1521 = vpop.f32.mrf.mxu0
      %v1522 = vadd.f32 0.0, %v1521
      %1523 = vmatmul.f32.gmra.mxu0 %v1481
      %v1524 = vpop.f32.mrf.mxu0
      %v1525 = vadd.f32 0.0, %v1524
      %1526 = vmatmul.f32.gmra.mxu0 %v1484
      %v1527 = vpop.f32.mrf.mxu0
      %v1528 = vadd.f32 0.0, %v1527
      %1529 = vmatmul.f32.gmra.mxu0 %v1487
      %v1530 = vpop.f32.mrf.mxu0
      %v1531 = vadd.f32 0.0, %v1530
      %1532 = vmatmul.f32.gmra.mxu0 %v1490
      %v1533 = vpop.f32.mrf.mxu0
      %v1534 = vadd.f32 0.0, %v1533
      %1535 = vmatmul.f32.gmra.mxu0 %v1493
      %v1536 = vpop.f32.mrf.mxu0
      %v1537 = vadd.f32 0.0, %v1536
      %1538 = vmatmul.f32.gmra.mxu0 %v1496
      %v1539 = vpop.f32.mrf.mxu0
      %v1540 = vadd.f32 0.0, %v1539
      %1541 = vdwg.mxu0
      %s1542 = scalar_lea.vmem %s3, 8
      %v1543 = vld [vmem:[%s1542] sm:$0xff]
      %1544 = vmatpush.msra.mxu0 0.0
      %1545 = vmatpush.msra.mxu0 0.0
      %1546 = vmatpush.msra.mxu0 0.0
      %1547 = vmatpush.msra.mxu0 0.0
      %1548 = vmatpush.msra.mxu0 0.0
      %1549 = vmatpush.msra.mxu0 0.0
      %1550 = vmatpush.msra.mxu0 0.0
      %1551 = vmatpush.msra.mxu0 0.0
      %1552 = vmatpush.msra.mxu0 0.0
      %1553 = vmatpush.msra.mxu0 0.0
      %1554 = vmatpush.msra.mxu0 0.0
      %1555 = vmatpush.msra.mxu0 0.0
      %1556 = vmatpush.msra.mxu0 0.0
      %1557 = vmatpush.msra.mxu0 0.0
      %1558 = vmatpush.msra.mxu0 0.0
      %1559 = vmatpush.msra.mxu0 %v1543
      %1560 = vmatmul.f32.gmra.mxu0 %v1472
      %v1561 = vpop.f32.mrf.mxu0
      %v1562 = vadd.f32 0.0, %v1561
      %1563 = vmatmul.f32.gmra.mxu0 %v1475
      %v1564 = vpop.f32.mrf.mxu0
      %v1565 = vadd.f32 0.0, %v1564
      %1566 = vmatmul.f32.gmra.mxu0 %v1478
      %v1567 = vpop.f32.mrf.mxu0
      %v1568 = vadd.f32 0.0, %v1567
      %1569 = vmatmul.f32.gmra.mxu0 %v1481
      %v1570 = vpop.f32.mrf.mxu0
      %v1571 = vadd.f32 0.0, %v1570
      %1572 = vmatmul.f32.gmra.mxu0 %v1484
      %v1573 = vpop.f32.mrf.mxu0
      %v1574 = vadd.f32 0.0, %v1573
      %1575 = vmatmul.f32.gmra.mxu0 %v1487
      %v1576 = vpop.f32.mrf.mxu0
      %v1577 = vadd.f32 0.0, %v1576
      %1578 = vmatmul.f32.gmra.mxu0 %v1490
      %v1579 = vpop.f32.mrf.mxu0
      %v1580 = vadd.f32 0.0, %v1579
      %1581 = vmatmul.f32.gmra.mxu0 %v1493
      %v1582 = vpop.f32.mrf.mxu0
      %v1583 = vadd.f32 0.0, %v1582
      %1584 = vmatmul.f32.gmra.mxu0 %v1496
      %v1585 = vpop.f32.mrf.mxu0
      %v1586 = vadd.f32 0.0, %v1585
      %1587 = vdwg.mxu0
      %s1588 = scalar_lea.vmem %s3, 16
      %v1589 = vld [vmem:[%s1588] sm:$0xff]
      %1590 = vmatpush.msra.mxu0 0.0
      %1591 = vmatpush.msra.mxu0 0.0
      %1592 = vmatpush.msra.mxu0 0.0
      %1593 = vmatpush.msra.mxu0 0.0
      %1594 = vmatpush.msra.mxu0 0.0
      %1595 = vmatpush.msra.mxu0 0.0
      %1596 = vmatpush.msra.mxu0 0.0
      %1597 = vmatpush.msra.mxu0 0.0
      %1598 = vmatpush.msra.mxu0 0.0
      %1599 = vmatpush.msra.mxu0 0.0
      %1600 = vmatpush.msra.mxu0 0.0
      %1601 = vmatpush.msra.mxu0 0.0
      %1602 = vmatpush.msra.mxu0 0.0
      %1603 = vmatpush.msra.mxu0 0.0
      %1604 = vmatpush.msra.mxu0 0.0
      %1605 = vmatpush.msra.mxu0 %v1589
      %1606 = vmatmul.f32.gmra.mxu0 %v1472
      %v1607 = vpop.f32.mrf.mxu0
      %v1608 = vadd.f32 0.0, %v1607
      %1609 = vmatmul.f32.gmra.mxu0 %v1475
      %v1610 = vpop.f32.mrf.mxu0
      %v1611 = vadd.f32 0.0, %v1610
      %1612 = vmatmul.f32.gmra.mxu0 %v1478
      %v1613 = vpop.f32.mrf.mxu0
      %v1614 = vadd.f32 0.0, %v1613
      %1615 = vmatmul.f32.gmra.mxu0 %v1481
      %v1616 = vpop.f32.mrf.mxu0
      %v1617 = vadd.f32 0.0, %v1616
      %1618 = vmatmul.f32.gmra.mxu0 %v1484
      %v1619 = vpop.f32.mrf.mxu0
      %v1620 = vadd.f32 0.0, %v1619
      %1621 = vmatmul.f32.gmra.mxu0 %v1487
      %v1622 = vpop.f32.mrf.mxu0
      %v1623 = vadd.f32 0.0, %v1622
      %1624 = vmatmul.f32.gmra.mxu0 %v1490
      %v1625 = vpop.f32.mrf.mxu0
      %v1626 = vadd.f32 0.0, %v1625
      %1627 = vmatmul.f32.gmra.mxu0 %v1493
      %v1628 = vpop.f32.mrf.mxu0
      %v1629 = vadd.f32 0.0, %v1628
      %1630 = vmatmul.f32.gmra.mxu0 %v1496
      %v1631 = vpop.f32.mrf.mxu0
      %v1632 = vadd.f32 0.0, %v1631
      %1633 = vdwg.mxu0
      %v1634 = vmax.f32 %v1516, %v1562
      %v1635 = vmax.f32 %v1519, %v1565
      %v1636 = vmax.f32 %v1522, %v1568
      %v1637 = vmax.f32 %v1525, %v1571
      %v1638 = vmax.f32 %v1528, %v1574
      %v1639 = vmax.f32 %v1531, %v1577
      %v1640 = vmax.f32 %v1534, %v1580
      %v1641 = vmax.f32 %v1537, %v1583
      %v1642 = vmax.f32 %v1540, %v1586
      %v1643 = vmax.f32 %v1634, %v1608
      %v1644 = vmax.f32 %v1635, %v1611
      %v1645 = vmax.f32 %v1636, %v1614
      %v1646 = vmax.f32 %v1637, %v1617
      %v1647 = vmax.f32 %v1638, %v1620
      %v1648 = vmax.f32 %v1639, %v1623
      %v1649 = vmax.f32 %v1640, %v1626
      %v1650 = vmax.f32 %v1641, %v1629
      %v1651 = vmax.f32 %v1642, %v1632
      %v1652 = vmax.f32 %v1643, %v1644
      %v1653 = vmax.f32 %v1652, %v1645
      %v1655 = vrot.slane %v1653, 1
      %v1656 = vrot.slane %v1653, 2
      %v1657 = vrot.slane %v1653, 3
      %v1658 = vrot.slane %v1653, 4
      %v1659 = vrot.slane %v1653, 5
      %v1660 = vrot.slane %v1653, 6
      %v1661 = vrot.slane %v1653, 7
      %vm1669 = vcmask 24576
      %1670 = vst.msk [vmem:[%s217] sm:$0x1] %vm1669, %v1653
      %1671 = vst.msk [vmem:[%s217 + $0x4] sm:$0x1] %vm1669, %v1655
      %1672 = vst.msk [vmem:[%s217 + $0x8] sm:$0x1] %vm1669, %v1656
      %1673 = vst.msk [vmem:[%s217 + $0xc] sm:$0x1] %vm1669, %v1657
      %1674 = vst.msk [vmem:[%s217 + $0x10] sm:$0x1] %vm1669, %v1658
      %1675 = vst.msk [vmem:[%s217 + $0x14] sm:$0x1] %vm1669, %v1659
      %1676 = vst.msk [vmem:[%s217 + $0x18] sm:$0x1] %vm1669, %v1660
      %1677 = vst.msk [vmem:[%s217 + $0x1c] sm:$0x1] %vm1669, %v1661
      %v1678 = vmax.f32 %v1645, %v1646
      %v1679 = vmax.f32 %v1678, %v1647
      %v1681 = vrot.slane %v1679, 1
      %v1682 = vrot.slane %v1679, 2
      %v1683 = vrot.slane %v1679, 3
      %v1684 = vrot.slane %v1679, 4
      %v1685 = vrot.slane %v1679, 5
      %v1686 = vrot.slane %v1679, 6
      %v1687 = vrot.slane %v1679, 7
      %1695 = vst.msk [vmem:[%s217 + $0x1] sm:$0x1] %vm1669, %v1679
      %1696 = vst.msk [vmem:[%s217 + $0x5] sm:$0x1] %vm1669, %v1681
      %1697 = vst.msk [vmem:[%s217 + $0x9] sm:$0x1] %vm1669, %v1682
      %1698 = vst.msk [vmem:[%s217 + $0xd] sm:$0x1] %vm1669, %v1683
      %1699 = vst.msk [vmem:[%s217 + $0x11] sm:$0x1] %vm1669, %v1684
      %1700 = vst.msk [vmem:[%s217 + $0x15] sm:$0x1] %vm1669, %v1685
      %1701 = vst.msk [vmem:[%s217 + $0x19] sm:$0x1] %vm1669, %v1686
      %1702 = vst.msk [vmem:[%s217 + $0x1d] sm:$0x1] %vm1669, %v1687
      %v1703 = vmax.f32 %v1647, %v1648
      %v1704 = vmax.f32 %v1703, %v1649
      %v1706 = vrot.slane %v1704, 1
      %v1707 = vrot.slane %v1704, 2
      %v1708 = vrot.slane %v1704, 3
      %v1709 = vrot.slane %v1704, 4
      %v1710 = vrot.slane %v1704, 5
      %v1711 = vrot.slane %v1704, 6
      %v1712 = vrot.slane %v1704, 7
      %1720 = vst.msk [vmem:[%s217 + $0x2] sm:$0x1] %vm1669, %v1704
      %1721 = vst.msk [vmem:[%s217 + $0x6] sm:$0x1] %vm1669, %v1706
      %1722 = vst.msk [vmem:[%s217 + $0xa] sm:$0x1] %vm1669, %v1707
      %1723 = vst.msk [vmem:[%s217 + $0xe] sm:$0x1] %vm1669, %v1708
      %1724 = vst.msk [vmem:[%s217 + $0x12] sm:$0x1] %vm1669, %v1709
      %1725 = vst.msk [vmem:[%s217 + $0x16] sm:$0x1] %vm1669, %v1710
      %1726 = vst.msk [vmem:[%s217 + $0x1a] sm:$0x1] %vm1669, %v1711
      %1727 = vst.msk [vmem:[%s217 + $0x1e] sm:$0x1] %vm1669, %v1712
      %v1728 = vmax.f32 %v1649, %v1650
      %v1729 = vmax.f32 %v1728, %v1651
      %v1731 = vrot.slane %v1729, 1
      %v1732 = vrot.slane %v1729, 2
      %v1733 = vrot.slane %v1729, 3
      %v1734 = vrot.slane %v1729, 4
      %v1735 = vrot.slane %v1729, 5
      %v1736 = vrot.slane %v1729, 6
      %v1737 = vrot.slane %v1729, 7
      %1745 = vst.msk [vmem:[%s217 + $0x3] sm:$0x1] %vm1669, %v1729
      %1746 = vst.msk [vmem:[%s217 + $0x7] sm:$0x1] %vm1669, %v1731
      %1747 = vst.msk [vmem:[%s217 + $0xb] sm:$0x1] %vm1669, %v1732
      %1748 = vst.msk [vmem:[%s217 + $0xf] sm:$0x1] %vm1669, %v1733
      %1749 = vst.msk [vmem:[%s217 + $0x13] sm:$0x1] %vm1669, %v1734
      %1750 = vst.msk [vmem:[%s217 + $0x17] sm:$0x1] %vm1669, %v1735
      %1751 = vst.msk [vmem:[%s217 + $0x1b] sm:$0x1] %vm1669, %v1736
      %1752 = vst.msk [vmem:[%s217 + $0x1f] sm:$0x1] %vm1669, %v1737
      %p1753 = scmp.lt.s32.totalorder %s19, 1
      %s1754 = scalar_select %p1753, %s19, 1
      %p1755 = scmp.lt.s32.totalorder %s20, 0
      %s1756 = scalar_select %p1755, %s20, 0
      %s1757 = smul.addr %s1754, 8
      %s1758 = sadd.s32 %s1756, %s1757
      %s1759 = smul.addr %s1758, 4
      %s1760 = scalar_lea.vmem %s4, %s1759
      // Predicated region
      $region37: #{stem_forward.1} parent=35 // pred_check
        %p1761 = pneg %p136
      $region38: #{stem_forward.1} parent=35 // pred_check_branch
        %1763 = sbr.rel (%p1761) target = $region40
      $region39: #{stem_forward.1} parent=35 // pred_region
        _
      $region40: #{stem_forward.1} parent=35 // pred_fallthru
        _
    $region36: #{stem_forward.1} parent=5 // pred_fallthru
      _
    %p1764 = scmp.le.s32.totalorder 2, %s10
    // Predicated region
    $region41: #{stem_forward.1} parent=5 // pred_check
      %p1765 = pneg %p1764
    $region42: #{stem_forward.1} parent=5 // pred_check_branch
      %1767 = sbr.rel (%p1765) target = $region44
    $region43: #{stem_forward.1} parent=5 // pred_region
      %s1768 = ssub.s32 %s10, 2
      // Predicated region
      $region45: #{stem_forward.1} parent=43 // pred_check
        %p1769 = pneg %p142
      $region46: #{stem_forward.1} parent=43 // pred_check_branch
        %1771 = sbr.rel (%p1769) target = $region48
      $region47: #{stem_forward.1} parent=43 // pred_region
        %p1772 = scmp.lt.s32.totalorder %s21, 1
        %s1773 = scalar_select %p1772, %s21, 1
        %p1774 = scmp.lt.s32.totalorder %s22, 0
        %s1775 = scalar_select %p1774, %s22, 0
        %s1776 = smul.addr %s1773, 8
        %s1777 = sadd.s32 %s1775, %s1776
        %s1778 = smul.addr %s1777, 4
        %s1779 = scalar_lea.vmem %s4, %s1778
      $region48: #{stem_forward.1} parent=43 // pred_fallthru
        _
    $region44: #{stem_forward.1} parent=5 // pred_fallthru
      _
  $region6: #{stem_forward.1} parent=0 // loop_footer
    %s14 = sadd.s32 1, %s10
  $region7: #{stem_forward.1} parent=0 // loop_footer_branch
    %9 = sbr.rel target = $region3
  $region8: #{stem_forward.1} parent=0 // loop_exit
    _

</llo_original>
